<compile_context>
chip_gen: v6e
topology: v6e:2x2x1
jax: 0.10.0
libtpu: 0.0.40
codegen_flags: <defaults>
</compile_context>

<pallas_src>
import functools

import jax
import jax.numpy as jnp
from jax.experimental import pallas as pl
from jax.experimental.pallas import tpu as pltpu

EPS_BN = 1e-5     # nn.BatchNorm1d default eps
EPS_COS = 1e-8    # F.cosine_similarity default eps

VMEM_SPEC = pl.BlockSpec(memory_space=pltpu.MemorySpace.VMEM)

# Small-scale dims consistent with the module structure
# (original: backbone->1000, proj hidden/out = 2048, pred hidden = 512).
B, C, H, W = 8, 4, 16, 16
IN_FLAT = C * H * W          # 1024
FEAT = 128                   # backbone output dim   (stand-in for 1000)
PROJ_H = 256                 # projector hidden/out  (stand-in for 2048)
PROJ_OUT = 256
PRED_H = 128                 # predictor hidden      (stand-in for 512)
VEC_W = 256                  # packed vector-table width (>= max feature dim)

# Row indices of the packed (16, VEC_W) f32 bias/gamma/beta table.
(R_BB_B,
 R_PJ1_B, R_PJ1_G, R_PJ1_BE,
 R_PJ2_B, R_PJ2_G, R_PJ2_BE,
 R_PJ3_B, R_PJ3_G, R_PJ3_BE,
 R_PD1_B, R_PD1_G, R_PD1_BE,
 R_PD2_B) = range(14)


# ---------------------------------------------------------------------------
# Fused Pallas kernel: full SimSiam forward for both views + loss
# ---------------------------------------------------------------------------
def _simsiam_fused_kernel(x1_ref, x2_ref,            # (B, IN_FLAT) f32 each
                          w_bb_ref,                   # (IN_FLAT, FEAT)  bf16
                          wk128_ref,                  # (128, 512)       bf16
                          wk256_ref,                  # (256, 640)       bf16
                          vec_ref,                    # (16, VEC_W)      f32
                          loss_ref,                   # (1, 1) f32 (SMEM)
                          *, nb):                     # per-view batch (static)
    vec = vec_ref[...]                                # load table once

    def vrow(r, dim):                                 # (1, dim) f32 row
        return vec[r:r + 1, :dim]

    def linear(a, w, b):                              # bf16 MXU, f32 accum
        return jnp.dot(a.astype(jnp.bfloat16), w,
                       preferred_element_type=jnp.float32) + b

    def bn(y, g, be):
        # Training-mode BatchNorm1d with PER-VIEW (biased) batch statistics,
        # matching two separate PyTorch encoder()/predictor() calls.
        # (2, nb, D) reshape is f32-sublane aligned (nb == 8) -> no copies.
        d = y.shape[-1]
        y3 = y.reshape(2, nb, d)
        mean = jnp.mean(y3, axis=1, keepdims=True)
        var = jnp.mean(jnp.square(y3 - mean), axis=1, keepdims=True)
        yn = ((y3 - mean) * jax.lax.rsqrt(var + EPS_BN)).reshape(2 * nb, d)
        return yn * g + be

    # Un-concat packed weights (lane slices at multiples of 128: tile aligned).
    wk128 = wk128_ref[...]
    wk256 = wk256_ref[...]
    pj1_w = wk128[:, :PROJ_H]
    pd2_w = wk128[:, PROJ_H:PROJ_H + PROJ_OUT]
    pj2_w = wk256[:, :PROJ_H]
    pj3_w = wk256[:, PROJ_H:PROJ_H + PROJ_OUT]
    pd1_w = wk256[:, PROJ_H + PROJ_OUT:PROJ_H + PROJ_OUT + PRED_H]

    # Stack the two augmented views along batch: (2B, IN_FLAT) f32, aligned.
    x = jnp.concatenate([x1_ref[...], x2_ref[...]], axis=0)

    # ---- encoder: backbone stand-in + projection_MLP (3 layers) ----
    feat = linear(x, w_bb_ref[...], vrow(R_BB_B, FEAT))
    h = jnp.maximum(bn(linear(feat, pj1_w, vrow(R_PJ1_B, PROJ_H)),
                       vrow(R_PJ1_G, PROJ_H), vrow(R_PJ1_BE, PROJ_H)), 0.0)
    h = jnp.maximum(bn(linear(h, pj2_w, vrow(R_PJ2_B, PROJ_H)),
                       vrow(R_PJ2_G, PROJ_H), vrow(R_PJ2_BE, PROJ_H)), 0.0)
    z = bn(linear(h, pj3_w, vrow(R_PJ3_B, PROJ_OUT)),
           vrow(R_PJ3_G, PROJ_OUT), vrow(R_PJ3_BE, PROJ_OUT))   # (2B, PROJ_OUT)

    # ---- predictor: prediction_MLP (2 layers, no BN/ReLU on output fc) ----
    h = jnp.maximum(bn(linear(z, pd1_w, vrow(R_PD1_B, PRED_H)),
                       vrow(R_PD1_G, PRED_H), vrow(R_PD1_BE, PRED_H)), 0.0)
    p = linear(h, pd2_w, vrow(R_PD2_B, PROJ_OUT))               # (2B, PROJ_OUT)

    # ---- loss: D(p1, z2)/2 + D(p2, z1)/2 (f32) ----
    # Swap the two view-halves of z with an XLU sublane roll (no slices).
    # TODO(synk): training would additionally need stop-gradient on z
    # (z.detach()); the forward loss value is unaffected.
    z_sw = pltpu.roll(z, shift=nb, axis=0)                      # [z2 ; z1]
    d = jnp.sum(p * z_sw, axis=-1, keepdims=True)
    pn2 = jnp.sum(p * p, axis=-1, keepdims=True)
    zn2 = jnp.sum(z_sw * z_sw, axis=-1, keepdims=True)
    eps2 = EPS_COS * EPS_COS
    # F.cosine_similarity: x.y / (max(|x|, eps) * max(|y|, eps))  -> EUP rsqrt
    cos = (d * jax.lax.rsqrt(jnp.maximum(pn2, eps2))
             * jax.lax.rsqrt(jnp.maximum(zn2, eps2)))
    # mean over 2B rows == (mean over p1/z2)/2 + (mean over p2/z1)/2
    loss_ref[0, 0] = jnp.sum(cos) * (-1.0 / (2 * nb))


# ---------------------------------------------------------------------------
# Parameter init (deterministic, f32 masters)
# ---------------------------------------------------------------------------
def _init_linear(key, in_dim, out_dim):
    kw, kb = jax.random.split(key)
    scale = 1.0 / jnp.sqrt(jnp.float32(in_dim))
    w = jax.random.normal(kw, (in_dim, out_dim), jnp.float32) * scale
    b = jax.random.normal(kb, (1, out_dim), jnp.float32) * scale
    return w, b


def _init_bn(key, dim):
    kg, kb = jax.random.split(key)
    gamma = 1.0 + 0.1 * jax.random.normal(kg, (1, dim), jnp.float32)
    beta = 0.1 * jax.random.normal(kb, (1, dim), jnp.float32)
    return gamma, beta


def init_params(key):
    keys = jax.random.split(key, 16)
    p = {}
    # backbone stand-in: flatten + Linear(IN_FLAT, FEAT)
    p["bb_w"], p["bb_b"] = _init_linear(keys[0], IN_FLAT, FEAT)
    # projection_MLP(1000 -> 2048 -> 2048 -> 2048), scaled down
    p["pj1_w"], p["pj1_b"] = _init_linear(keys[1], FEAT, PROJ_H)
    p["pj1_g"], p["pj1_be"] = _init_bn(keys[2], PROJ_H)
    p["pj2_w"], p["pj2_b"] = _init_linear(keys[3], PROJ_H, PROJ_H)
    p["pj2_g"], p["pj2_be"] = _init_bn(keys[4], PROJ_H)
    p["pj3_w"], p["pj3_b"] = _init_linear(keys[5], PROJ_H, PROJ_OUT)
    p["pj3_g"], p["pj3_be"] = _init_bn(keys[6], PROJ_OUT)
    # prediction_MLP(2048 -> 512 -> 2048), scaled down
    p["pd1_w"], p["pd1_b"] = _init_linear(keys[7], PROJ_OUT, PRED_H)
    p["pd1_g"], p["pd1_be"] = _init_bn(keys[8], PRED_H)
    p["pd2_w"], p["pd2_b"] = _init_linear(keys[9], PRED_H, PROJ_OUT)
    return p


def pack_params(p):
    """One-time packing (call once, OUTSIDE the per-step forward):
    bf16 weight masters (concatenated by shared K) + a single f32 table
    holding every bias / BN gamma / BN beta row (zero-padded to VEC_W)."""
    def row(v):
        return jnp.pad(v, ((0, 0), (0, VEC_W - v.shape[1])))

    vec = jnp.concatenate([
        row(p["bb_b"]),
        row(p["pj1_b"]), row(p["pj1_g"]), row(p["pj1_be"]),
        row(p["pj2_b"]), row(p["pj2_g"]), row(p["pj2_be"]),
        row(p["pj3_b"]), row(p["pj3_g"]), row(p["pj3_be"]),
        row(p["pd1_b"]), row(p["pd1_g"]), row(p["pd1_be"]),
        row(p["pd2_b"]),
    ], axis=0).astype(jnp.float32)
    vec = jnp.pad(vec, ((0, 16 - vec.shape[0]), (0, 0)))        # (16, VEC_W)

    bf = lambda w: w.astype(jnp.bfloat16)
    return {
        "w_bb": bf(p["bb_w"]),                                           # (1024, 128)
        "w_k128": bf(jnp.concatenate([p["pj1_w"], p["pd2_w"]], axis=1)), # (128, 512)
        "w_k256": bf(jnp.concatenate([p["pj2_w"], p["pj3_w"], p["pd1_w"]],
                                     axis=1)),                           # (256, 640)
        "vec": vec,
    }


# ---------------------------------------------------------------------------
# Forward wrapper: one fused pallas_call, 6 inputs, SMEM scalar loss out
# ---------------------------------------------------------------------------
@jax.jit
def simsiam_forward(packed, x1, x2):
    nb = x1.shape[0]
    x1f = x1.reshape(nb, -1)                 # (B, IN_FLAT) f32
    x2f = x2.reshape(nb, -1)

    kernel = functools.partial(_simsiam_fused_kernel, nb=nb)
    loss = pl.pallas_call(
        kernel,
        out_shape=jax.ShapeDtypeStruct((1, 1), jnp.float32),
        in_specs=[VMEM_SPEC] * 6,
        out_specs=pl.BlockSpec(memory_space=pltpu.MemorySpace.SMEM),
    )(x1f, x2f, packed["w_bb"], packed["w_k128"], packed["w_k256"],
      packed["vec"])
    return {"loss": loss[0, 0]}


if __name__ == "__main__":
    key = jax.random.PRNGKey(0)
    kp, k1, k2 = jax.random.split(key, 3)
    params = init_params(kp)
    packed = pack_params(params)             # one-time bf16 / packing step
    x1 = jax.random.normal(k1, (B, C, H, W), jnp.float32)
    x2 = jax.random.normal(k2, (B, C, H, W), jnp.float32)

    out = simsiam_forward(packed, x1, x2)
    jax.block_until_ready(out["loss"])
    assert out["loss"].shape == ()
    print("KERNEL_OK")
</pallas_src>

<mosaic_0001>
module attributes {stable_mosaic.version = 11 : i64} {
  func.func @_simsiam_fused_kernel(%arg0: memref<8x1024xf32, #tpu.memory_space<vmem>>, %arg1: memref<8x1024xf32, #tpu.memory_space<vmem>>, %arg2: memref<1024x128xbf16, #tpu.memory_space<vmem>>, %arg3: memref<128x512xbf16, #tpu.memory_space<vmem>>, %arg4: memref<256x640xbf16, #tpu.memory_space<vmem>>, %arg5: memref<16x256xf32, #tpu.memory_space<vmem>>, %arg6: memref<1x1xf32, #tpu.memory_space<smem>>) attributes {dimension_semantics = [], scalar_prefetch = 0 : i64, scratch_operands = 0 : i64, tpu.core_type = #tpu.core_type<tc>} {
    %c0 = arith.constant 0 : index
    %c0_0 = arith.constant 0 : index
    %0 = vector.load %arg5[%c0, %c0_0] : memref<16x256xf32, #tpu.memory_space<vmem>>, vector<16x256xf32>
    %c0_1 = arith.constant 0 : index
    %c0_2 = arith.constant 0 : index
    %1 = vector.load %arg3[%c0_1, %c0_2] : memref<128x512xbf16, #tpu.memory_space<vmem>>, vector<128x512xbf16>
    %c0_3 = arith.constant 0 : index
    %c0_4 = arith.constant 0 : index
    %2 = vector.load %arg4[%c0_3, %c0_4] : memref<256x640xbf16, #tpu.memory_space<vmem>>, vector<256x640xbf16>
    %3 = vector.extract_strided_slice %1 {offsets = [0, 0], sizes = [128, 256], strides = [1, 1]} : vector<128x512xbf16> to vector<128x256xbf16>
    %4 = vector.extract_strided_slice %1 {offsets = [0, 256], sizes = [128, 256], strides = [1, 1]} : vector<128x512xbf16> to vector<128x256xbf16>
    %5 = vector.extract_strided_slice %2 {offsets = [0, 0], sizes = [256, 256], strides = [1, 1]} : vector<256x640xbf16> to vector<256x256xbf16>
    %6 = vector.extract_strided_slice %2 {offsets = [0, 256], sizes = [256, 256], strides = [1, 1]} : vector<256x640xbf16> to vector<256x256xbf16>
    %7 = vector.extract_strided_slice %2 {offsets = [0, 512], sizes = [256, 128], strides = [1, 1]} : vector<256x640xbf16> to vector<256x128xbf16>
    %c0_5 = arith.constant 0 : index
    %c0_6 = arith.constant 0 : index
    %8 = vector.load %arg0[%c0_5, %c0_6] : memref<8x1024xf32, #tpu.memory_space<vmem>>, vector<8x1024xf32>
    %c0_7 = arith.constant 0 : index
    %c0_8 = arith.constant 0 : index
    %9 = vector.load %arg1[%c0_7, %c0_8] : memref<8x1024xf32, #tpu.memory_space<vmem>>, vector<8x1024xf32>
    %10 = tpu.concatenate %8, %9 in 0 : vector<8x1024xf32>, vector<8x1024xf32> -> vector<16x1024xf32>
    %c0_9 = arith.constant 0 : index
    %c0_10 = arith.constant 0 : index
    %11 = vector.load %arg2[%c0_9, %c0_10] : memref<1024x128xbf16, #tpu.memory_space<vmem>>, vector<1024x128xbf16>
    %12 = vector.extract_strided_slice %0 {offsets = [0, 0], sizes = [1, 128], strides = [1, 1]} : vector<16x256xf32> to vector<1x128xf32>
    %13 = arith.truncf %10 : vector<16x1024xf32> to vector<16x1024xbf16>
    %cst = arith.constant dense<0.000000e+00> : vector<16x128xf32>
    %14 = tpu.matmul %13, %11, %cst {dimension_numbers = #tpu.dot_dimension_numbers<[1], [0], [0], [1], [0, 0, 1, 1], [], []>} : vector<16x1024xbf16>, vector<1024x128xbf16>, vector<16x128xf32> -> vector<16x128xf32>
    %15 = vector.broadcast %12 : vector<1x128xf32> to vector<16x128xf32>
    %16 = arith.addf %14, %15 : vector<16x128xf32>
    %17 = vector.extract_strided_slice %0 {offsets = [1, 0], sizes = [1, 256], strides = [1, 1]} : vector<16x256xf32> to vector<1x256xf32>
    %18 = arith.truncf %16 : vector<16x128xf32> to vector<16x128xbf16>
    %cst_11 = arith.constant dense<0.000000e+00> : vector<16x256xf32>
    %19 = tpu.matmul %18, %3, %cst_11 {dimension_numbers = #tpu.dot_dimension_numbers<[1], [0], [0], [1], [0, 0, 1, 1], [], []>} : vector<16x128xbf16>, vector<128x256xbf16>, vector<16x256xf32> -> vector<16x256xf32>
    %20 = vector.broadcast %17 : vector<1x256xf32> to vector<16x256xf32>
    %21 = arith.addf %19, %20 : vector<16x256xf32>
    %22 = vector.extract_strided_slice %0 {offsets = [2, 0], sizes = [1, 256], strides = [1, 1]} : vector<16x256xf32> to vector<1x256xf32>
    %23 = vector.extract_strided_slice %0 {offsets = [3, 0], sizes = [1, 256], strides = [1, 1]} : vector<16x256xf32> to vector<1x256xf32>
    %24 = vector.shape_cast %21 : vector<16x256xf32> to vector<2x8x256xf32>
    %cst_12 = arith.constant dense<0.000000e+00> : vector<2x256xf32>
    %25 = vector.multi_reduction <add>, %24, %cst_12 [1] : vector<2x8x256xf32> to vector<2x256xf32>
    %26 = vector.shape_cast %25 : vector<2x256xf32> to vector<2x1x256xf32>
    %cst_13 = arith.constant 8.000000e+00 : f32
    %27 = vector.broadcast %cst_13 : f32 to vector<2x1x256xf32>
    %28 = arith.divf %26, %27 : vector<2x1x256xf32>
    %29 = vector.broadcast %28 : vector<2x1x256xf32> to vector<2x8x256xf32>
    %30 = arith.subf %24, %29 : vector<2x8x256xf32>
    %31 = arith.mulf %30, %30 : vector<2x8x256xf32>
    %cst_14 = arith.constant dense<0.000000e+00> : vector<2x256xf32>
    %32 = vector.multi_reduction <add>, %31, %cst_14 [1] : vector<2x8x256xf32> to vector<2x256xf32>
    %33 = vector.shape_cast %32 : vector<2x256xf32> to vector<2x1x256xf32>
    %cst_15 = arith.constant 8.000000e+00 : f32
    %34 = vector.broadcast %cst_15 : f32 to vector<2x1x256xf32>
    %35 = arith.divf %33, %34 : vector<2x1x256xf32>
    %36 = vector.broadcast %28 : vector<2x1x256xf32> to vector<2x8x256xf32>
    %37 = arith.subf %24, %36 : vector<2x8x256xf32>
    %cst_16 = arith.constant 9.99999974E-6 : f32
    %38 = vector.broadcast %cst_16 : f32 to vector<2x1x256xf32>
    %39 = arith.addf %35, %38 : vector<2x1x256xf32>
    %40 = math.rsqrt %39 : vector<2x1x256xf32>
    %41 = vector.broadcast %40 : vector<2x1x256xf32> to vector<2x8x256xf32>
    %42 = arith.mulf %37, %41 : vector<2x8x256xf32>
    %43 = vector.shape_cast %42 : vector<2x8x256xf32> to vector<16x256xf32>
    %44 = vector.broadcast %22 : vector<1x256xf32> to vector<16x256xf32>
    %45 = arith.mulf %43, %44 : vector<16x256xf32>
    %46 = vector.broadcast %23 : vector<1x256xf32> to vector<16x256xf32>
    %47 = arith.addf %45, %46 : vector<16x256xf32>
    %cst_17 = arith.constant 0.000000e+00 : f32
    %48 = vector.broadcast %cst_17 : f32 to vector<16x256xf32>
    %49 = arith.maximumf %47, %48 : vector<16x256xf32>
    %50 = vector.extract_strided_slice %0 {offsets = [4, 0], sizes = [1, 256], strides = [1, 1]} : vector<16x256xf32> to vector<1x256xf32>
    %51 = arith.truncf %49 : vector<16x256xf32> to vector<16x256xbf16>
    %cst_18 = arith.constant dense<0.000000e+00> : vector<16x256xf32>
    %52 = tpu.matmul %51, %5, %cst_18 {dimension_numbers = #tpu.dot_dimension_numbers<[1], [0], [0], [1], [0, 0, 1, 1], [], []>} : vector<16x256xbf16>, vector<256x256xbf16>, vector<16x256xf32> -> vector<16x256xf32>
    %53 = vector.broadcast %50 : vector<1x256xf32> to vector<16x256xf32>
    %54 = arith.addf %52, %53 : vector<16x256xf32>
    %55 = vector.extract_strided_slice %0 {offsets = [5, 0], sizes = [1, 256], strides = [1, 1]} : vector<16x256xf32> to vector<1x256xf32>
    %56 = vector.extract_strided_slice %0 {offsets = [6, 0], sizes = [1, 256], strides = [1, 1]} : vector<16x256xf32> to vector<1x256xf32>
    %57 = vector.shape_cast %54 : vector<16x256xf32> to vector<2x8x256xf32>
    %cst_19 = arith.constant dense<0.000000e+00> : vector<2x256xf32>
    %58 = vector.multi_reduction <add>, %57, %cst_19 [1] : vector<2x8x256xf32> to vector<2x256xf32>
    %59 = vector.shape_cast %58 : vector<2x256xf32> to vector<2x1x256xf32>
    %cst_20 = arith.constant 8.000000e+00 : f32
    %60 = vector.broadcast %cst_20 : f32 to vector<2x1x256xf32>
    %61 = arith.divf %59, %60 : vector<2x1x256xf32>
    %62 = vector.broadcast %61 : vector<2x1x256xf32> to vector<2x8x256xf32>
    %63 = arith.subf %57, %62 : vector<2x8x256xf32>
    %64 = arith.mulf %63, %63 : vector<2x8x256xf32>
    %cst_21 = arith.constant dense<0.000000e+00> : vector<2x256xf32>
    %65 = vector.multi_reduction <add>, %64, %cst_21 [1] : vector<2x8x256xf32> to vector<2x256xf32>
    %66 = vector.shape_cast %65 : vector<2x256xf32> to vector<2x1x256xf32>
    %cst_22 = arith.constant 8.000000e+00 : f32
    %67 = vector.broadcast %cst_22 : f32 to vector<2x1x256xf32>
    %68 = arith.divf %66, %67 : vector<2x1x256xf32>
    %69 = vector.broadcast %61 : vector<2x1x256xf32> to vector<2x8x256xf32>
    %70 = arith.subf %57, %69 : vector<2x8x256xf32>
    %cst_23 = arith.constant 9.99999974E-6 : f32
    %71 = vector.broadcast %cst_23 : f32 to vector<2x1x256xf32>
    %72 = arith.addf %68, %71 : vector<2x1x256xf32>
    %73 = math.rsqrt %72 : vector<2x1x256xf32>
    %74 = vector.broadcast %73 : vector<2x1x256xf32> to vector<2x8x256xf32>
    %75 = arith.mulf %70, %74 : vector<2x8x256xf32>
    %76 = vector.shape_cast %75 : vector<2x8x256xf32> to vector<16x256xf32>
    %77 = vector.broadcast %55 : vector<1x256xf32> to vector<16x256xf32>
    %78 = arith.mulf %76, %77 : vector<16x256xf32>
    %79 = vector.broadcast %56 : vector<1x256xf32> to vector<16x256xf32>
    %80 = arith.addf %78, %79 : vector<16x256xf32>
    %cst_24 = arith.constant 0.000000e+00 : f32
    %81 = vector.broadcast %cst_24 : f32 to vector<16x256xf32>
    %82 = arith.maximumf %80, %81 : vector<16x256xf32>
    %83 = vector.extract_strided_slice %0 {offsets = [7, 0], sizes = [1, 256], strides = [1, 1]} : vector<16x256xf32> to vector<1x256xf32>
    %84 = arith.truncf %82 : vector<16x256xf32> to vector<16x256xbf16>
    %cst_25 = arith.constant dense<0.000000e+00> : vector<16x256xf32>
    %85 = tpu.matmul %84, %6, %cst_25 {dimension_numbers = #tpu.dot_dimension_numbers<[1], [0], [0], [1], [0, 0, 1, 1], [], []>} : vector<16x256xbf16>, vector<256x256xbf16>, vector<16x256xf32> -> vector<16x256xf32>
    %86 = vector.broadcast %83 : vector<1x256xf32> to vector<16x256xf32>
    %87 = arith.addf %85, %86 : vector<16x256xf32>
    %88 = vector.extract_strided_slice %0 {offsets = [8, 0], sizes = [1, 256], strides = [1, 1]} : vector<16x256xf32> to vector<1x256xf32>
    %89 = vector.extract_strided_slice %0 {offsets = [9, 0], sizes = [1, 256], strides = [1, 1]} : vector<16x256xf32> to vector<1x256xf32>
    %90 = vector.shape_cast %87 : vector<16x256xf32> to vector<2x8x256xf32>
    %cst_26 = arith.constant dense<0.000000e+00> : vector<2x256xf32>
    %91 = vector.multi_reduction <add>, %90, %cst_26 [1] : vector<2x8x256xf32> to vector<2x256xf32>
    %92 = vector.shape_cast %91 : vector<2x256xf32> to vector<2x1x256xf32>
    %cst_27 = arith.constant 8.000000e+00 : f32
    %93 = vector.broadcast %cst_27 : f32 to vector<2x1x256xf32>
    %94 = arith.divf %92, %93 : vector<2x1x256xf32>
    %95 = vector.broadcast %94 : vector<2x1x256xf32> to vector<2x8x256xf32>
    %96 = arith.subf %90, %95 : vector<2x8x256xf32>
    %97 = arith.mulf %96, %96 : vector<2x8x256xf32>
    %cst_28 = arith.constant dense<0.000000e+00> : vector<2x256xf32>
    %98 = vector.multi_reduction <add>, %97, %cst_28 [1] : vector<2x8x256xf32> to vector<2x256xf32>
    %99 = vector.shape_cast %98 : vector<2x256xf32> to vector<2x1x256xf32>
    %cst_29 = arith.constant 8.000000e+00 : f32
    %100 = vector.broadcast %cst_29 : f32 to vector<2x1x256xf32>
    %101 = arith.divf %99, %100 : vector<2x1x256xf32>
    %102 = vector.broadcast %94 : vector<2x1x256xf32> to vector<2x8x256xf32>
    %103 = arith.subf %90, %102 : vector<2x8x256xf32>
    %cst_30 = arith.constant 9.99999974E-6 : f32
    %104 = vector.broadcast %cst_30 : f32 to vector<2x1x256xf32>
    %105 = arith.addf %101, %104 : vector<2x1x256xf32>
    %106 = math.rsqrt %105 : vector<2x1x256xf32>
    %107 = vector.broadcast %106 : vector<2x1x256xf32> to vector<2x8x256xf32>
    %108 = arith.mulf %103, %107 : vector<2x8x256xf32>
    %109 = vector.shape_cast %108 : vector<2x8x256xf32> to vector<16x256xf32>
    %110 = vector.broadcast %88 : vector<1x256xf32> to vector<16x256xf32>
    %111 = arith.mulf %109, %110 : vector<16x256xf32>
    %112 = vector.broadcast %89 : vector<1x256xf32> to vector<16x256xf32>
    %113 = arith.addf %111, %112 : vector<16x256xf32>
    %114 = vector.extract_strided_slice %0 {offsets = [10, 0], sizes = [1, 128], strides = [1, 1]} : vector<16x256xf32> to vector<1x128xf32>
    %115 = arith.truncf %113 : vector<16x256xf32> to vector<16x256xbf16>
    %cst_31 = arith.constant dense<0.000000e+00> : vector<16x128xf32>
    %116 = tpu.matmul %115, %7, %cst_31 {dimension_numbers = #tpu.dot_dimension_numbers<[1], [0], [0], [1], [0, 0, 1, 1], [], []>} : vector<16x256xbf16>, vector<256x128xbf16>, vector<16x128xf32> -> vector<16x128xf32>
    %117 = vector.broadcast %114 : vector<1x128xf32> to vector<16x128xf32>
    %118 = arith.addf %116, %117 : vector<16x128xf32>
    %119 = vector.extract_strided_slice %0 {offsets = [11, 0], sizes = [1, 128], strides = [1, 1]} : vector<16x256xf32> to vector<1x128xf32>
    %120 = vector.extract_strided_slice %0 {offsets = [12, 0], sizes = [1, 128], strides = [1, 1]} : vector<16x256xf32> to vector<1x128xf32>
    %121 = vector.shape_cast %118 : vector<16x128xf32> to vector<2x8x128xf32>
    %cst_32 = arith.constant dense<0.000000e+00> : vector<2x128xf32>
    %122 = vector.multi_reduction <add>, %121, %cst_32 [1] : vector<2x8x128xf32> to vector<2x128xf32>
    %123 = vector.shape_cast %122 : vector<2x128xf32> to vector<2x1x128xf32>
    %cst_33 = arith.constant 8.000000e+00 : f32
    %124 = vector.broadcast %cst_33 : f32 to vector<2x1x128xf32>
    %125 = arith.divf %123, %124 : vector<2x1x128xf32>
    %126 = vector.broadcast %125 : vector<2x1x128xf32> to vector<2x8x128xf32>
    %127 = arith.subf %121, %126 : vector<2x8x128xf32>
    %128 = arith.mulf %127, %127 : vector<2x8x128xf32>
    %cst_34 = arith.constant dense<0.000000e+00> : vector<2x128xf32>
    %129 = vector.multi_reduction <add>, %128, %cst_34 [1] : vector<2x8x128xf32> to vector<2x128xf32>
    %130 = vector.shape_cast %129 : vector<2x128xf32> to vector<2x1x128xf32>
    %cst_35 = arith.constant 8.000000e+00 : f32
    %131 = vector.broadcast %cst_35 : f32 to vector<2x1x128xf32>
    %132 = arith.divf %130, %131 : vector<2x1x128xf32>
    %133 = vector.broadcast %125 : vector<2x1x128xf32> to vector<2x8x128xf32>
    %134 = arith.subf %121, %133 : vector<2x8x128xf32>
    %cst_36 = arith.constant 9.99999974E-6 : f32
    %135 = vector.broadcast %cst_36 : f32 to vector<2x1x128xf32>
    %136 = arith.addf %132, %135 : vector<2x1x128xf32>
    %137 = math.rsqrt %136 : vector<2x1x128xf32>
    %138 = vector.broadcast %137 : vector<2x1x128xf32> to vector<2x8x128xf32>
    %139 = arith.mulf %134, %138 : vector<2x8x128xf32>
    %140 = vector.shape_cast %139 : vector<2x8x128xf32> to vector<16x128xf32>
    %141 = vector.broadcast %119 : vector<1x128xf32> to vector<16x128xf32>
    %142 = arith.mulf %140, %141 : vector<16x128xf32>
    %143 = vector.broadcast %120 : vector<1x128xf32> to vector<16x128xf32>
    %144 = arith.addf %142, %143 : vector<16x128xf32>
    %cst_37 = arith.constant 0.000000e+00 : f32
    %145 = vector.broadcast %cst_37 : f32 to vector<16x128xf32>
    %146 = arith.maximumf %144, %145 : vector<16x128xf32>
    %147 = vector.extract_strided_slice %0 {offsets = [13, 0], sizes = [1, 256], strides = [1, 1]} : vector<16x256xf32> to vector<1x256xf32>
    %148 = arith.truncf %146 : vector<16x128xf32> to vector<16x128xbf16>
    %cst_38 = arith.constant dense<0.000000e+00> : vector<16x256xf32>
    %149 = tpu.matmul %148, %4, %cst_38 {dimension_numbers = #tpu.dot_dimension_numbers<[1], [0], [0], [1], [0, 0, 1, 1], [], []>} : vector<16x128xbf16>, vector<128x256xbf16>, vector<16x256xf32> -> vector<16x256xf32>
    %150 = vector.broadcast %147 : vector<1x256xf32> to vector<16x256xf32>
    %151 = arith.addf %149, %150 : vector<16x256xf32>
    %c8_i32 = arith.constant 8 : i32
    %152 = tpu.dynamic_rotate %113 by %c8_i32 dim 0 : vector<16x256xf32>, i32 -> vector<16x256xf32>
    %153 = arith.mulf %151, %152 : vector<16x256xf32>
    %cst_39 = arith.constant dense<0.000000e+00> : vector<16xf32>
    %154 = vector.multi_reduction <add>, %153, %cst_39 [1] : vector<16x256xf32> to vector<16xf32>
    %155 = vector.shape_cast %154 : vector<16xf32> to vector<16x1xf32>
    %156 = arith.mulf %151, %151 : vector<16x256xf32>
    %cst_40 = arith.constant dense<0.000000e+00> : vector<16xf32>
    %157 = vector.multi_reduction <add>, %156, %cst_40 [1] : vector<16x256xf32> to vector<16xf32>
    %158 = vector.shape_cast %157 : vector<16xf32> to vector<16x1xf32>
    %159 = arith.mulf %152, %152 : vector<16x256xf32>
    %cst_41 = arith.constant dense<0.000000e+00> : vector<16xf32>
    %160 = vector.multi_reduction <add>, %159, %cst_41 [1] : vector<16x256xf32> to vector<16xf32>
    %161 = vector.shape_cast %160 : vector<16xf32> to vector<16x1xf32>
    %cst_42 = arith.constant 1.000000e-16 : f32
    %162 = vector.broadcast %cst_42 : f32 to vector<16x1xf32>
    %163 = arith.maximumf %158, %162 : vector<16x1xf32>
    %164 = math.rsqrt %163 : vector<16x1xf32>
    %165 = arith.mulf %155, %164 : vector<16x1xf32>
    %cst_43 = arith.constant 1.000000e-16 : f32
    %166 = vector.broadcast %cst_43 : f32 to vector<16x1xf32>
    %167 = arith.maximumf %161, %166 : vector<16x1xf32>
    %168 = math.rsqrt %167 : vector<16x1xf32>
    %169 = arith.mulf %165, %168 : vector<16x1xf32>
    %170 = vector.shape_cast %169 : vector<16x1xf32> to vector<1x16x1xf32>
    %cst_44 = arith.constant dense<0.000000e+00> : vector<1xf32>
    %171 = vector.multi_reduction <add>, %170, %cst_44 [1, 2] : vector<1x16x1xf32> to vector<1xf32>
    %172 = vector.shape_cast %171 : vector<1xf32> to vector<1x1x1xf32>
    %173 = vector.extract %172[0, 0, 0] : f32 from vector<1x1x1xf32>
    %cst_45 = arith.constant -6.250000e-02 : f32
    %174 = arith.mulf %173, %cst_45 : f32
    %c0_46 = arith.constant 0 : index
    %c0_47 = arith.constant 0 : index
    %175 = memref.load %arg6[%c0_46, %c0_47] : memref<1x1xf32, #tpu.memory_space<smem>>
    memref.store %174, %arg6[%c0_46, %c0_47] : memref<1x1xf32, #tpu.memory_space<smem>>
    return
  }
}

</mosaic_0001>

<llo_original>
// kernel: simsiam_forward.1
$region0: #{simsiam_forward.1}
  #allocation0 [shape = 'u32[]', space=smem, size = 0x4, offset = 0x4, fixed_abs, tag = 'smem constant byte address 0x4 - core index']
  #allocation1 [shape = 'u32[144,128]{1,0:T(1,128)}', space=vmem, size = 0x12000, scoped, tag = 'internal scratch']
  %s0 = inlined_call_operand.vmem [shape: f32[8,1024], index: 0, kind: input, shape index: {}]
  %s1 = inlined_call_operand.vmem [shape: f32[8,1024], index: 1, kind: input, shape index: {}]
  %s2 = inlined_call_operand.hbm [shape: bf16[1024,128], index: 2, kind: input, shape index: {}]
  %s3 = inlined_call_operand.hbm [shape: bf16[128,512], index: 3, kind: input, shape index: {}]
  %s4 = inlined_call_operand.vmem [shape: bf16[256,640], index: 4, kind: input, shape index: {}]
  %s5 = inlined_call_operand.hbm [shape: f32[16,256], index: 5, kind: input, shape index: {}]
  %s6 = inlined_call_operand.hbm [shape: f32[1,1], index: 6, kind: output, shape index: {}]
  %s7 = sld [smem:[#allocation0]]
  $region46: #{simsiam_forward.1} parent=0
    _
  %s9 = ssub.s32 1, %s7
  %s10 = scalar_select 0, %s9, %s7
  $region1: #{simsiam_forward.1} parent=0
    #allocation2 [shape = 'u8[262144]{0}', space=vmem, size = 0x40000, scoped, tag = 'input window, operand 2, single buffered']
    #allocation3 [shape = 's32[1]{0}', space=sflag, size = 0x4, scoped, tag = 'scoped memory for simsiam_forward.1']
    #allocation4 [shape = 's32[1]{0}', space=sflag, size = 0x4, scoped, tag = 'scoped memory for simsiam_forward.1']
    #allocation5 [shape = 'u8[131072]{0}', space=vmem, size = 0x20000, scoped, tag = 'input window, operand 3, single buffered']
    #allocation6 [shape = 's32[1]{0}', space=sflag, size = 0x4, scoped, tag = 'scoped memory for simsiam_forward.1']
    #allocation7 [shape = 'u8[16384]{0}', space=vmem, size = 0x4000, scoped, tag = 'input window, operand 5, single buffered']
    #allocation8 [shape = 'u8[512]{0}', space=smem, size = 0x200, scoped, tag = 'output window, operand 0, single buffered']
    %11 = vsyncpa [#allocation3], 0
    %12 = vsyncpa [#allocation6], 0
    %13 = vsyncpa [#allocation4], 0
    // Predicated region
    $region2: #{simsiam_forward.1} parent=1 // pred_check
      _
    $region3: #{simsiam_forward.1} parent=1 // pred_check_branch
      %15 = sbr.rel (0) target = $region5
    $region4: #{simsiam_forward.1} parent=1 // pred_region
      _
    $region5: #{simsiam_forward.1} parent=1 // pred_fallthru
      _
    // Predicated region
    $region6: #{simsiam_forward.1} parent=1 // pred_check
      _
    $region7: #{simsiam_forward.1} parent=1 // pred_check_branch
      %17 = sbr.rel (0) target = $region9
    $region8: #{simsiam_forward.1} parent=1 // pred_region
      _
    $region9: #{simsiam_forward.1} parent=1 // pred_fallthru
      _
    // Predicated region
    $region10: #{simsiam_forward.1} parent=1 // pred_check
      _
    $region11: #{simsiam_forward.1} parent=1 // pred_check_branch
      %19 = sbr.rel (0) target = $region13
    $region12: #{simsiam_forward.1} parent=1 // pred_region
      %s21 = ssub.s32 8192, 8192
      %22 = vsyncadd [#allocation3], %s21
      %s23 = sshll.u32 [#allocation2], 4
      %s24 = int_to_ptr.vmem [resolvable:$true] %s23
      %29 = dma.hbm_to_vmem [thread:$0]  %s2, 8192, %s24, [#allocation3], 64, 64, 4
    $region13: #{simsiam_forward.1} parent=1 // pred_fallthru
      _
    // Predicated region
    $region14: #{simsiam_forward.1} parent=1 // pred_check
      _
    $region15: #{simsiam_forward.1} parent=1 // pred_check_branch
      %31 = sbr.rel (0) target = $region17
    $region16: #{simsiam_forward.1} parent=1 // pred_region
      %s33 = ssub.s32 4096, 4096
      %34 = vsyncadd [#allocation6], %s33
      %s35 = sshll.u32 [#allocation5], 4
      %s36 = int_to_ptr.vmem [resolvable:$true] %s35
      %41 = dma.hbm_to_vmem [thread:$0]  %s3, 4096, %s36, [#allocation6], 256, 256, 16
    $region17: #{simsiam_forward.1} parent=1 // pred_fallthru
      _
    // Predicated region
    $region18: #{simsiam_forward.1} parent=1 // pred_check
      _
    $region19: #{simsiam_forward.1} parent=1 // pred_check_branch
      %43 = sbr.rel (0) target = $region21
    $region20: #{simsiam_forward.1} parent=1 // pred_region
      _
    $region21: #{simsiam_forward.1} parent=1 // pred_fallthru
      _
    // Predicated region
    $region22: #{simsiam_forward.1} parent=1 // pred_check
      _
    $region23: #{simsiam_forward.1} parent=1 // pred_check_branch
      %45 = sbr.rel (0) target = $region25
    $region24: #{simsiam_forward.1} parent=1 // pred_region
      %s47 = ssub.s32 512, 512
      %48 = vsyncadd [#allocation6], %s47
      %s49 = sshll.u32 [#allocation7], 4
      %s50 = int_to_ptr.vmem [resolvable:$true] %s49
      %55 = dma.hbm_to_vmem [thread:$0]  %s5, 512, %s50, [#allocation6], 256, 256, 16
    $region25: #{simsiam_forward.1} parent=1 // pred_fallthru
      _
    // Predicated region
    $region26: #{simsiam_forward.1} parent=1 // pred_check
      _
    $region27: #{simsiam_forward.1} parent=1 // pred_check_branch
      %57 = sbr.rel (0) target = $region29
    $region28: #{simsiam_forward.1} parent=1 // pred_region
      %58 = dma.done [#allocation3], 8192
    $region29: #{simsiam_forward.1} parent=1 // pred_fallthru
      _
    // Predicated region
    $region30: #{simsiam_forward.1} parent=1 // pred_check
      _
    $region31: #{simsiam_forward.1} parent=1 // pred_check_branch
      %60 = sbr.rel (0) target = $region33
    $region32: #{simsiam_forward.1} parent=1 // pred_region
      %61 = dma.done [#allocation6], 4096
    $region33: #{simsiam_forward.1} parent=1 // pred_fallthru
      _
    // Predicated region
    $region34: #{simsiam_forward.1} parent=1 // pred_check
      _
    $region35: #{simsiam_forward.1} parent=1 // pred_check_branch
      %63 = sbr.rel (0) target = $region37
    $region36: #{simsiam_forward.1} parent=1 // pred_region
      %64 = dma.done [#allocation6], 512
    $region37: #{simsiam_forward.1} parent=1 // pred_fallthru
      _
    %v66 = vld [vmem:[#allocation7] sm:$0xff]
    %v67 = vld [vmem:[#allocation7 + $0x8] sm:$0xff]
    %v68 = vld [vmem:[#allocation7 + $0x10] sm:$0xff]
    %v69 = vld [vmem:[#allocation7 + $0x18] sm:$0xff]
    %v70 = vld [vmem:[#allocation5] sm:$0xff]
    %v71 = vld [vmem:[#allocation5 + $0x8] sm:$0xff]
    %v72 = vld [vmem:[#allocation5 + $0x10] sm:$0xff]
    %v73 = vld [vmem:[#allocation5 + $0x18] sm:$0xff]
    %v74 = vld [vmem:[#allocation5 + $0x20] sm:$0xff]
    %v75 = vld [vmem:[#allocation5 + $0x28] sm:$0xff]
    %v76 = vld [vmem:[#allocation5 + $0x30] sm:$0xff]
    %v77 = vld [vmem:[#allocation5 + $0x38] sm:$0xff]
    %v78 = vld [vmem:[#allocation5 + $0x40] sm:$0xff]
    %v79 = vld [vmem:[#allocation5 + $0x48] sm:$0xff]
    %v80 = vld [vmem:[#allocation5 + $0x50] sm:$0xff]
    %v81 = vld [vmem:[#allocation5 + $0x58] sm:$0xff]
    %v82 = vld [vmem:[#allocation5 + $0x60] sm:$0xff]
    %v83 = vld [vmem:[#allocation5 + $0x68] sm:$0xff]
    %v84 = vld [vmem:[#allocation5 + $0x70] sm:$0xff]
    %v85 = vld [vmem:[#allocation5 + $0x78] sm:$0xff]
    %v86 = vld [vmem:[#allocation5 + $0x80] sm:$0xff]
    %v87 = vld [vmem:[#allocation5 + $0x88] sm:$0xff]
    %v88 = vld [vmem:[#allocation5 + $0x90] sm:$0xff]
    %v89 = vld [vmem:[#allocation5 + $0x98] sm:$0xff]
    %v90 = vld [vmem:[#allocation5 + $0xa0] sm:$0xff]
    %v91 = vld [vmem:[#allocation5 + $0xa8] sm:$0xff]
    %v92 = vld [vmem:[#allocation5 + $0xb0] sm:$0xff]
    %v93 = vld [vmem:[#allocation5 + $0xb8] sm:$0xff]
    %v94 = vld [vmem:[#allocation5 + $0xc0] sm:$0xff]
    %v95 = vld [vmem:[#allocation5 + $0xc8] sm:$0xff]
    %v96 = vld [vmem:[#allocation5 + $0xd0] sm:$0xff]
    %v97 = vld [vmem:[#allocation5 + $0xd8] sm:$0xff]
    %v98 = vld [vmem:[#allocation5 + $0xe0] sm:$0xff]
    %v99 = vld [vmem:[#allocation5 + $0xe8] sm:$0xff]
    %v100 = vld [vmem:[#allocation5 + $0xf0] sm:$0xff]
    %v101 = vld [vmem:[#allocation5 + $0xf8] sm:$0xff]
    %v102 = vld [vmem:[%s4] sm:$0xff]
    %v103 = vld [vmem:[%s4 + $0x8] sm:$0xff]
    %v104 = vld [vmem:[%s4 + $0x10] sm:$0xf]
    %v105 = vld [vmem:[%s4 + $0x14] sm:$0xff]
    %v106 = vld [vmem:[%s4 + $0x1c] sm:$0xff]
    %v107 = vld [vmem:[%s4 + $0x24] sm:$0xf]
    %v108 = vld [vmem:[%s4 + $0x28] sm:$0xff]
    %v109 = vld [vmem:[%s4 + $0x30] sm:$0xff]
    %v110 = vld [vmem:[%s4 + $0x38] sm:$0xf]
    %v111 = vld [vmem:[%s4 + $0x3c] sm:$0xff]
    %v112 = vld [vmem:[%s4 + $0x44] sm:$0xff]
    %v113 = vld [vmem:[%s4 + $0x4c] sm:$0xf]
    %v114 = vld [vmem:[%s4 + $0x50] sm:$0xff]
    %v115 = vld [vmem:[%s4 + $0x58] sm:$0xff]
    %v116 = vld [vmem:[%s4 + $0x60] sm:$0xf]
    %v117 = vld [vmem:[%s4 + $0x64] sm:$0xff]
    %v118 = vld [vmem:[%s4 + $0x6c] sm:$0xff]
    %v119 = vld [vmem:[%s4 + $0x74] sm:$0xf]
    %v120 = vld [vmem:[%s4 + $0x78] sm:$0xff]
    %v121 = vld [vmem:[%s4 + $0x80] sm:$0xff]
    %v122 = vld [vmem:[%s4 + $0x88] sm:$0xf]
    %v123 = vld [vmem:[%s4 + $0x8c] sm:$0xff]
    %v124 = vld [vmem:[%s4 + $0x94] sm:$0xff]
    %v125 = vld [vmem:[%s4 + $0x9c] sm:$0xf]
    %v126 = vld [vmem:[%s4 + $0xa0] sm:$0xff]
    %v127 = vld [vmem:[%s4 + $0xa8] sm:$0xff]
    %v128 = vld [vmem:[%s4 + $0xb0] sm:$0xf]
    %v129 = vld [vmem:[%s4 + $0xb4] sm:$0xff]
    %v130 = vld [vmem:[%s4 + $0xbc] sm:$0xff]
    %v131 = vld [vmem:[%s4 + $0xc4] sm:$0xf]
    %v132 = vld [vmem:[%s4 + $0xc8] sm:$0xff]
    %v133 = vld [vmem:[%s4 + $0xd0] sm:$0xff]
    %v134 = vld [vmem:[%s4 + $0xd8] sm:$0xf]
    %v135 = vld [vmem:[%s4 + $0xdc] sm:$0xff]
    %v136 = vld [vmem:[%s4 + $0xe4] sm:$0xff]
    %v137 = vld [vmem:[%s4 + $0xec] sm:$0xf]
    %v138 = vld [vmem:[%s4 + $0xf0] sm:$0xff]
    %v139 = vld [vmem:[%s4 + $0xf8] sm:$0xff]
    %v140 = vld [vmem:[%s4 + $0x100] sm:$0xf]
    %v141 = vld [vmem:[%s4 + $0x104] sm:$0xff]
    %v142 = vld [vmem:[%s4 + $0x10c] sm:$0xff]
    %v143 = vld [vmem:[%s4 + $0x114] sm:$0xf]
    %v144 = vld [vmem:[%s4 + $0x118] sm:$0xff]
    %v145 = vld [vmem:[%s4 + $0x120] sm:$0xff]
    %v146 = vld [vmem:[%s4 + $0x128] sm:$0xf]
    %v147 = vld [vmem:[%s4 + $0x12c] sm:$0xff]
    %v148 = vld [vmem:[%s4 + $0x134] sm:$0xff]
    %v149 = vld [vmem:[%s4 + $0x13c] sm:$0xf]
    %v150 = vld [vmem:[%s4 + $0x140] sm:$0xff]
    %v151 = vld [vmem:[%s4 + $0x148] sm:$0xff]
    %v152 = vld [vmem:[%s4 + $0x150] sm:$0xf]
    %v153 = vld [vmem:[%s4 + $0x154] sm:$0xff]
    %v154 = vld [vmem:[%s4 + $0x15c] sm:$0xff]
    %v155 = vld [vmem:[%s4 + $0x164] sm:$0xf]
    %v156 = vld [vmem:[%s4 + $0x168] sm:$0xff]
    %v157 = vld [vmem:[%s4 + $0x170] sm:$0xff]
    %v158 = vld [vmem:[%s4 + $0x178] sm:$0xf]
    %v159 = vld [vmem:[%s4 + $0x17c] sm:$0xff]
    %v160 = vld [vmem:[%s4 + $0x184] sm:$0xff]
    %v161 = vld [vmem:[%s4 + $0x18c] sm:$0xf]
    %v162 = vld [vmem:[%s4 + $0x190] sm:$0xff]
    %v163 = vld [vmem:[%s4 + $0x198] sm:$0xff]
    %v164 = vld [vmem:[%s4 + $0x1a0] sm:$0xf]
    %v165 = vld [vmem:[%s4 + $0x1a4] sm:$0xff]
    %v166 = vld [vmem:[%s4 + $0x1ac] sm:$0xff]
    %v167 = vld [vmem:[%s4 + $0x1b4] sm:$0xf]
    %v168 = vld [vmem:[%s4 + $0x1b8] sm:$0xff]
    %v169 = vld [vmem:[%s4 + $0x1c0] sm:$0xff]
    %v170 = vld [vmem:[%s4 + $0x1c8] sm:$0xf]
    %v171 = vld [vmem:[%s4 + $0x1cc] sm:$0xff]
    %v172 = vld [vmem:[%s4 + $0x1d4] sm:$0xff]
    %v173 = vld [vmem:[%s4 + $0x1dc] sm:$0xf]
    %v174 = vld [vmem:[%s4 + $0x1e0] sm:$0xff]
    %v175 = vld [vmem:[%s4 + $0x1e8] sm:$0xff]
    %v176 = vld [vmem:[%s4 + $0x1f0] sm:$0xf]
    %v177 = vld [vmem:[%s4 + $0x1f4] sm:$0xff]
    %v178 = vld [vmem:[%s4 + $0x1fc] sm:$0xff]
    %v179 = vld [vmem:[%s4 + $0x204] sm:$0xf]
    %v180 = vld [vmem:[%s4 + $0x208] sm:$0xff]
    %v181 = vld [vmem:[%s4 + $0x210] sm:$0xff]
    %v182 = vld [vmem:[%s4 + $0x218] sm:$0xf]
    %v183 = vld [vmem:[%s4 + $0x21c] sm:$0xff]
    %v184 = vld [vmem:[%s4 + $0x224] sm:$0xff]
    %v185 = vld [vmem:[%s4 + $0x22c] sm:$0xf]
    %v186 = vld [vmem:[%s4 + $0x230] sm:$0xff]
    %v187 = vld [vmem:[%s4 + $0x238] sm:$0xff]
    %v188 = vld [vmem:[%s4 + $0x240] sm:$0xf]
    %v189 = vld [vmem:[%s4 + $0x244] sm:$0xff]
    %v190 = vld [vmem:[%s4 + $0x24c] sm:$0xff]
    %v191 = vld [vmem:[%s4 + $0x254] sm:$0xf]
    %v192 = vld [vmem:[%s4 + $0x258] sm:$0xff]
    %v193 = vld [vmem:[%s4 + $0x260] sm:$0xff]
    %v194 = vld [vmem:[%s4 + $0x268] sm:$0xf]
    %v195 = vld [vmem:[%s4 + $0x26c] sm:$0xff]
    %v196 = vld [vmem:[%s4 + $0x274] sm:$0xff]
    %v197 = vld [vmem:[%s4 + $0x27c] sm:$0xf]
    %v198 = vld [vmem:[%s0] sm:$0xff]
    %v199 = vld [vmem:[%s0 + $0x8] sm:$0xff]
    %v200 = vld [vmem:[%s0 + $0x10] sm:$0xff]
    %v201 = vld [vmem:[%s0 + $0x18] sm:$0xff]
    %v202 = vld [vmem:[%s0 + $0x20] sm:$0xff]
    %v203 = vld [vmem:[%s0 + $0x28] sm:$0xff]
    %v204 = vld [vmem:[%s0 + $0x30] sm:$0xff]
    %v205 = vld [vmem:[%s0 + $0x38] sm:$0xff]
    %v206 = vld [vmem:[%s1] sm:$0xff]
    %v207 = vld [vmem:[%s1 + $0x8] sm:$0xff]
    %v208 = vld [vmem:[%s1 + $0x10] sm:$0xff]
    %v209 = vld [vmem:[%s1 + $0x18] sm:$0xff]
    %v210 = vld [vmem:[%s1 + $0x20] sm:$0xff]
    %v211 = vld [vmem:[%s1 + $0x28] sm:$0xff]
    %v212 = vld [vmem:[%s1 + $0x30] sm:$0xff]
    %v213 = vld [vmem:[%s1 + $0x38] sm:$0xff]
    %v214 = vld [vmem:[#allocation2] sm:$0xf]
    %v215 = vld [vmem:[#allocation2 + $0x4] sm:$0xf]
    %v216 = vld [vmem:[#allocation2 + $0x8] sm:$0xf]
    %v217 = vld [vmem:[#allocation2 + $0xc] sm:$0xf]
    %v218 = vld [vmem:[#allocation2 + $0x10] sm:$0xf]
    %v219 = vld [vmem:[#allocation2 + $0x14] sm:$0xf]
    %v220 = vld [vmem:[#allocation2 + $0x18] sm:$0xf]
    %v221 = vld [vmem:[#allocation2 + $0x1c] sm:$0xf]
    %v222 = vld [vmem:[#allocation2 + $0x20] sm:$0xf]
    %v223 = vld [vmem:[#allocation2 + $0x24] sm:$0xf]
    %v224 = vld [vmem:[#allocation2 + $0x28] sm:$0xf]
    %v225 = vld [vmem:[#allocation2 + $0x2c] sm:$0xf]
    %v226 = vld [vmem:[#allocation2 + $0x30] sm:$0xf]
    %v227 = vld [vmem:[#allocation2 + $0x34] sm:$0xf]
    %v228 = vld [vmem:[#allocation2 + $0x38] sm:$0xf]
    %v229 = vld [vmem:[#allocation2 + $0x3c] sm:$0xf]
    %v230 = vld [vmem:[#allocation2 + $0x40] sm:$0xf]
    %v231 = vld [vmem:[#allocation2 + $0x44] sm:$0xf]
    %v232 = vld [vmem:[#allocation2 + $0x48] sm:$0xf]
    %v233 = vld [vmem:[#allocation2 + $0x4c] sm:$0xf]
    %v234 = vld [vmem:[#allocation2 + $0x50] sm:$0xf]
    %v235 = vld [vmem:[#allocation2 + $0x54] sm:$0xf]
    %v236 = vld [vmem:[#allocation2 + $0x58] sm:$0xf]
    %v237 = vld [vmem:[#allocation2 + $0x5c] sm:$0xf]
    %v238 = vld [vmem:[#allocation2 + $0x60] sm:$0xf]
    %v239 = vld [vmem:[#allocation2 + $0x64] sm:$0xf]
    %v240 = vld [vmem:[#allocation2 + $0x68] sm:$0xf]
    %v241 = vld [vmem:[#allocation2 + $0x6c] sm:$0xf]
    %v242 = vld [vmem:[#allocation2 + $0x70] sm:$0xf]
    %v243 = vld [vmem:[#allocation2 + $0x74] sm:$0xf]
    %v244 = vld [vmem:[#allocation2 + $0x78] sm:$0xf]
    %v245 = vld [vmem:[#allocation2 + $0x7c] sm:$0xf]
    %v246 = vld [vmem:[#allocation2 + $0x80] sm:$0xf]
    %v247 = vld [vmem:[#allocation2 + $0x84] sm:$0xf]
    %v248 = vld [vmem:[#allocation2 + $0x88] sm:$0xf]
    %v249 = vld [vmem:[#allocation2 + $0x8c] sm:$0xf]
    %v250 = vld [vmem:[#allocation2 + $0x90] sm:$0xf]
    %v251 = vld [vmem:[#allocation2 + $0x94] sm:$0xf]
    %v252 = vld [vmem:[#allocation2 + $0x98] sm:$0xf]
    %v253 = vld [vmem:[#allocation2 + $0x9c] sm:$0xf]
    %v254 = vld [vmem:[#allocation2 + $0xa0] sm:$0xf]
    %v255 = vld [vmem:[#allocation2 + $0xa4] sm:$0xf]
    %v256 = vld [vmem:[#allocation2 + $0xa8] sm:$0xf]
    %v257 = vld [vmem:[#allocation2 + $0xac] sm:$0xf]
    %v258 = vld [vmem:[#allocation2 + $0xb0] sm:$0xf]
    %v259 = vld [vmem:[#allocation2 + $0xb4] sm:$0xf]
    %v260 = vld [vmem:[#allocation2 + $0xb8] sm:$0xf]
    %v261 = vld [vmem:[#allocation2 + $0xbc] sm:$0xf]
    %v262 = vld [vmem:[#allocation2 + $0xc0] sm:$0xf]
    %v263 = vld [vmem:[#allocation2 + $0xc4] sm:$0xf]
    %v264 = vld [vmem:[#allocation2 + $0xc8] sm:$0xf]
    %v265 = vld [vmem:[#allocation2 + $0xcc] sm:$0xf]
    %v266 = vld [vmem:[#allocation2 + $0xd0] sm:$0xf]
    %v267 = vld [vmem:[#allocation2 + $0xd4] sm:$0xf]
    %v268 = vld [vmem:[#allocation2 + $0xd8] sm:$0xf]
    %v269 = vld [vmem:[#allocation2 + $0xdc] sm:$0xf]
    %v270 = vld [vmem:[#allocation2 + $0xe0] sm:$0xf]
    %v271 = vld [vmem:[#allocation2 + $0xe4] sm:$0xf]
    %v272 = vld [vmem:[#allocation2 + $0xe8] sm:$0xf]
    %v273 = vld [vmem:[#allocation2 + $0xec] sm:$0xf]
    %v274 = vld [vmem:[#allocation2 + $0xf0] sm:$0xf]
    %v275 = vld [vmem:[#allocation2 + $0xf4] sm:$0xf]
    %v276 = vld [vmem:[#allocation2 + $0xf8] sm:$0xf]
    %v277 = vld [vmem:[#allocation2 + $0xfc] sm:$0xf]
    %v278 = vld [vmem:[#allocation2 + $0x100] sm:$0xf]
    %v279 = vld [vmem:[#allocation2 + $0x104] sm:$0xf]
    %v280 = vld [vmem:[#allocation2 + $0x108] sm:$0xf]
    %v281 = vld [vmem:[#allocation2 + $0x10c] sm:$0xf]
    %v282 = vld [vmem:[#allocation2 + $0x110] sm:$0xf]
    %v283 = vld [vmem:[#allocation2 + $0x114] sm:$0xf]
    %v284 = vld [vmem:[#allocation2 + $0x118] sm:$0xf]
    %v285 = vld [vmem:[#allocation2 + $0x11c] sm:$0xf]
    %v286 = vld [vmem:[#allocation2 + $0x120] sm:$0xf]
    %v287 = vld [vmem:[#allocation2 + $0x124] sm:$0xf]
    %v288 = vld [vmem:[#allocation2 + $0x128] sm:$0xf]
    %v289 = vld [vmem:[#allocation2 + $0x12c] sm:$0xf]
    %v290 = vld [vmem:[#allocation2 + $0x130] sm:$0xf]
    %v291 = vld [vmem:[#allocation2 + $0x134] sm:$0xf]
    %v292 = vld [vmem:[#allocation2 + $0x138] sm:$0xf]
    %v293 = vld [vmem:[#allocation2 + $0x13c] sm:$0xf]
    %v294 = vld [vmem:[#allocation2 + $0x140] sm:$0xf]
    %v295 = vld [vmem:[#allocation2 + $0x144] sm:$0xf]
    %v296 = vld [vmem:[#allocation2 + $0x148] sm:$0xf]
    %v297 = vld [vmem:[#allocation2 + $0x14c] sm:$0xf]
    %v298 = vld [vmem:[#allocation2 + $0x150] sm:$0xf]
    %v299 = vld [vmem:[#allocation2 + $0x154] sm:$0xf]
    %v300 = vld [vmem:[#allocation2 + $0x158] sm:$0xf]
    %v301 = vld [vmem:[#allocation2 + $0x15c] sm:$0xf]
    %v302 = vld [vmem:[#allocation2 + $0x160] sm:$0xf]
    %v303 = vld [vmem:[#allocation2 + $0x164] sm:$0xf]
    %v304 = vld [vmem:[#allocation2 + $0x168] sm:$0xf]
    %v305 = vld [vmem:[#allocation2 + $0x16c] sm:$0xf]
    %v306 = vld [vmem:[#allocation2 + $0x170] sm:$0xf]
    %v307 = vld [vmem:[#allocation2 + $0x174] sm:$0xf]
    %v308 = vld [vmem:[#allocation2 + $0x178] sm:$0xf]
    %v309 = vld [vmem:[#allocation2 + $0x17c] sm:$0xf]
    %v310 = vld [vmem:[#allocation2 + $0x180] sm:$0xf]
    %v311 = vld [vmem:[#allocation2 + $0x184] sm:$0xf]
    %v312 = vld [vmem:[#allocation2 + $0x188] sm:$0xf]
    %v313 = vld [vmem:[#allocation2 + $0x18c] sm:$0xf]
    %v314 = vld [vmem:[#allocation2 + $0x190] sm:$0xf]
    %v315 = vld [vmem:[#allocation2 + $0x194] sm:$0xf]
    %v316 = vld [vmem:[#allocation2 + $0x198] sm:$0xf]
    %v317 = vld [vmem:[#allocation2 + $0x19c] sm:$0xf]
    %v318 = vld [vmem:[#allocation2 + $0x1a0] sm:$0xf]
    %v319 = vld [vmem:[#allocation2 + $0x1a4] sm:$0xf]
    %v320 = vld [vmem:[#allocation2 + $0x1a8] sm:$0xf]
    %v321 = vld [vmem:[#allocation2 + $0x1ac] sm:$0xf]
    %v322 = vld [vmem:[#allocation2 + $0x1b0] sm:$0xf]
    %v323 = vld [vmem:[#allocation2 + $0x1b4] sm:$0xf]
    %v324 = vld [vmem:[#allocation2 + $0x1b8] sm:$0xf]
    %v325 = vld [vmem:[#allocation2 + $0x1bc] sm:$0xf]
    %v326 = vld [vmem:[#allocation2 + $0x1c0] sm:$0xf]
    %v327 = vld [vmem:[#allocation2 + $0x1c4] sm:$0xf]
    %v328 = vld [vmem:[#allocation2 + $0x1c8] sm:$0xf]
    %v329 = vld [vmem:[#allocation2 + $0x1cc] sm:$0xf]
    %v330 = vld [vmem:[#allocation2 + $0x1d0] sm:$0xf]
    %v331 = vld [vmem:[#allocation2 + $0x1d4] sm:$0xf]
    %v332 = vld [vmem:[#allocation2 + $0x1d8] sm:$0xf]
    %v333 = vld [vmem:[#allocation2 + $0x1dc] sm:$0xf]
    %v334 = vld [vmem:[#allocation2 + $0x1e0] sm:$0xf]
    %v335 = vld [vmem:[#allocation2 + $0x1e4] sm:$0xf]
    %v336 = vld [vmem:[#allocation2 + $0x1e8] sm:$0xf]
    %v337 = vld [vmem:[#allocation2 + $0x1ec] sm:$0xf]
    %v338 = vld [vmem:[#allocation2 + $0x1f0] sm:$0xf]
    %v339 = vld [vmem:[#allocation2 + $0x1f4] sm:$0xf]
    %v340 = vld [vmem:[#allocation2 + $0x1f8] sm:$0xf]
    %v341 = vld [vmem:[#allocation2 + $0x1fc] sm:$0xf]
    %v342 = vpack.c.bf16 %v206, %v198
    %v343 = vpack.c.bf16 %v207, %v199
    %v344 = vpack.c.bf16 %v208, %v200
    %v345 = vpack.c.bf16 %v209, %v201
    %v346 = vpack.c.bf16 %v210, %v202
    %v347 = vpack.c.bf16 %v211, %v203
    %v348 = vpack.c.bf16 %v212, %v204
    %v349 = vpack.c.bf16 %v213, %v205
    %v350 = vlaneseq
    %v351 = vshrl.u32 %v350, 7
    %v352 = vsub.s32 0, %v351
    %v353 = vrot.slane %v66, %v352
    %v482 = vunpack.c.l.b16 %v214
    %v483 = vunpack.c.l.b16 %v215
    %v484 = vunpack.c.l.b16 %v216
    %v485 = vunpack.c.l.b16 %v217
    %v486 = vunpack.c.l.b16 %v218
    %v487 = vunpack.c.l.b16 %v219
    %v488 = vunpack.c.l.b16 %v220
    %v489 = vunpack.c.l.b16 %v221
    %v490 = vunpack.c.l.b16 %v222
    %v491 = vunpack.c.l.b16 %v223
    %v492 = vunpack.c.l.b16 %v224
    %v493 = vunpack.c.l.b16 %v225
    %v494 = vunpack.c.l.b16 %v226
    %v495 = vunpack.c.l.b16 %v227
    %v496 = vunpack.c.l.b16 %v228
    %v497 = vunpack.c.l.b16 %v229
    %v498 = vunpack.c.l.b16 %v230
    %v499 = vunpack.c.l.b16 %v231
    %v500 = vunpack.c.l.b16 %v232
    %v501 = vunpack.c.l.b16 %v233
    %v502 = vunpack.c.l.b16 %v234
    %v503 = vunpack.c.l.b16 %v235
    %v504 = vunpack.c.l.b16 %v236
    %v505 = vunpack.c.l.b16 %v237
    %v506 = vunpack.c.l.b16 %v238
    %v507 = vunpack.c.l.b16 %v239
    %v508 = vunpack.c.l.b16 %v240
    %v509 = vunpack.c.l.b16 %v241
    %v510 = vunpack.c.l.b16 %v242
    %v511 = vunpack.c.l.b16 %v243
    %v512 = vunpack.c.l.b16 %v244
    %v513 = vunpack.c.l.b16 %v245
    %v514 = vunpack.c.l.b16 %v246
    %v515 = vunpack.c.l.b16 %v247
    %v516 = vunpack.c.l.b16 %v248
    %v517 = vunpack.c.l.b16 %v249
    %v518 = vunpack.c.l.b16 %v250
    %v519 = vunpack.c.l.b16 %v251
    %v520 = vunpack.c.l.b16 %v252
    %v521 = vunpack.c.l.b16 %v253
    %v522 = vunpack.c.l.b16 %v254
    %v523 = vunpack.c.l.b16 %v255
    %v524 = vunpack.c.l.b16 %v256
    %v525 = vunpack.c.l.b16 %v257
    %v526 = vunpack.c.l.b16 %v258
    %v527 = vunpack.c.l.b16 %v259
    %v528 = vunpack.c.l.b16 %v260
    %v529 = vunpack.c.l.b16 %v261
    %v530 = vunpack.c.l.b16 %v262
    %v531 = vunpack.c.l.b16 %v263
    %v532 = vunpack.c.l.b16 %v264
    %v533 = vunpack.c.l.b16 %v265
    %v534 = vunpack.c.l.b16 %v266
    %v535 = vunpack.c.l.b16 %v267
    %v536 = vunpack.c.l.b16 %v268
    %v537 = vunpack.c.l.b16 %v269
    %v538 = vunpack.c.l.b16 %v270
    %v539 = vunpack.c.l.b16 %v271
    %v540 = vunpack.c.l.b16 %v272
    %v541 = vunpack.c.l.b16 %v273
    %v542 = vunpack.c.l.b16 %v274
    %v543 = vunpack.c.l.b16 %v275
    %v544 = vunpack.c.l.b16 %v276
    %v545 = vunpack.c.l.b16 %v277
    %v546 = vunpack.c.l.b16 %v278
    %v547 = vunpack.c.l.b16 %v279
    %v548 = vunpack.c.l.b16 %v280
    %v549 = vunpack.c.l.b16 %v281
    %v550 = vunpack.c.l.b16 %v282
    %v551 = vunpack.c.l.b16 %v283
    %v552 = vunpack.c.l.b16 %v284
    %v553 = vunpack.c.l.b16 %v285
    %v554 = vunpack.c.l.b16 %v286
    %v555 = vunpack.c.l.b16 %v287
    %v556 = vunpack.c.l.b16 %v288
    %v557 = vunpack.c.l.b16 %v289
    %v558 = vunpack.c.l.b16 %v290
    %v559 = vunpack.c.l.b16 %v291
    %v560 = vunpack.c.l.b16 %v292
    %v561 = vunpack.c.l.b16 %v293
    %v562 = vunpack.c.l.b16 %v294
    %v563 = vunpack.c.l.b16 %v295
    %v564 = vunpack.c.l.b16 %v296
    %v565 = vunpack.c.l.b16 %v297
    %v566 = vunpack.c.l.b16 %v298
    %v567 = vunpack.c.l.b16 %v299
    %v568 = vunpack.c.l.b16 %v300
    %v569 = vunpack.c.l.b16 %v301
    %v570 = vunpack.c.l.b16 %v302
    %v571 = vunpack.c.l.b16 %v303
    %v572 = vunpack.c.l.b16 %v304
    %v573 = vunpack.c.l.b16 %v305
    %v574 = vunpack.c.l.b16 %v306
    %v575 = vunpack.c.l.b16 %v307
    %v576 = vunpack.c.l.b16 %v308
    %v577 = vunpack.c.l.b16 %v309
    %v578 = vunpack.c.l.b16 %v310
    %v579 = vunpack.c.l.b16 %v311
    %v580 = vunpack.c.l.b16 %v312
    %v581 = vunpack.c.l.b16 %v313
    %v582 = vunpack.c.l.b16 %v314
    %v583 = vunpack.c.l.b16 %v315
    %v584 = vunpack.c.l.b16 %v316
    %v585 = vunpack.c.l.b16 %v317
    %v586 = vunpack.c.l.b16 %v318
    %v587 = vunpack.c.l.b16 %v319
    %v588 = vunpack.c.l.b16 %v320
    %v589 = vunpack.c.l.b16 %v321
    %v590 = vunpack.c.l.b16 %v322
    %v591 = vunpack.c.l.b16 %v323
    %v592 = vunpack.c.l.b16 %v324
    %v593 = vunpack.c.l.b16 %v325
    %v594 = vunpack.c.l.b16 %v326
    %v595 = vunpack.c.l.b16 %v327
    %v596 = vunpack.c.l.b16 %v328
    %v597 = vunpack.c.l.b16 %v329
    %v598 = vunpack.c.l.b16 %v330
    %v599 = vunpack.c.l.b16 %v331
    %v600 = vunpack.c.l.b16 %v332
    %v601 = vunpack.c.l.b16 %v333
    %v602 = vunpack.c.l.b16 %v334
    %v603 = vunpack.c.l.b16 %v335
    %v604 = vunpack.c.l.b16 %v336
    %v605 = vunpack.c.l.b16 %v337
    %v606 = vunpack.c.l.b16 %v338
    %v607 = vunpack.c.l.b16 %v339
    %v608 = vunpack.c.l.b16 %v340
    %v609 = vunpack.c.l.b16 %v341
    %v610 = vpack.c.b16 %v483, %v482
    %v611 = vpack.c.b16 %v485, %v484
    %v612 = vpack.c.b16 %v487, %v486
    %v613 = vpack.c.b16 %v489, %v488
    %v614 = vpack.c.b16 %v491, %v490
    %v615 = vpack.c.b16 %v493, %v492
    %v616 = vpack.c.b16 %v495, %v494
    %v617 = vpack.c.b16 %v497, %v496
    %v618 = vpack.c.b16 %v499, %v498
    %v619 = vpack.c.b16 %v501, %v500
    %v620 = vpack.c.b16 %v503, %v502
    %v621 = vpack.c.b16 %v505, %v504
    %v622 = vpack.c.b16 %v507, %v506
    %v623 = vpack.c.b16 %v509, %v508
    %v624 = vpack.c.b16 %v511, %v510
    %v625 = vpack.c.b16 %v513, %v512
    %v626 = vpack.c.b16 %v515, %v514
    %v627 = vpack.c.b16 %v517, %v516
    %v628 = vpack.c.b16 %v519, %v518
    %v629 = vpack.c.b16 %v521, %v520
    %v630 = vpack.c.b16 %v523, %v522
    %v631 = vpack.c.b16 %v525, %v524
    %v632 = vpack.c.b16 %v527, %v526
    %v633 = vpack.c.b16 %v529, %v528
    %v634 = vpack.c.b16 %v531, %v530
    %v635 = vpack.c.b16 %v533, %v532
    %v636 = vpack.c.b16 %v535, %v534
    %v637 = vpack.c.b16 %v537, %v536
    %v638 = vpack.c.b16 %v539, %v538
    %v639 = vpack.c.b16 %v541, %v540
    %v640 = vpack.c.b16 %v543, %v542
    %v641 = vpack.c.b16 %v545, %v544
    %v642 = vpack.c.b16 %v547, %v546
    %v643 = vpack.c.b16 %v549, %v548
    %v644 = vpack.c.b16 %v551, %v550
    %v645 = vpack.c.b16 %v553, %v552
    %v646 = vpack.c.b16 %v555, %v554
    %v647 = vpack.c.b16 %v557, %v556
    %v648 = vpack.c.b16 %v559, %v558
    %v649 = vpack.c.b16 %v561, %v560
    %v650 = vpack.c.b16 %v563, %v562
    %v651 = vpack.c.b16 %v565, %v564
    %v652 = vpack.c.b16 %v567, %v566
    %v653 = vpack.c.b16 %v569, %v568
    %v654 = vpack.c.b16 %v571, %v570
    %v655 = vpack.c.b16 %v573, %v572
    %v656 = vpack.c.b16 %v575, %v574
    %v657 = vpack.c.b16 %v577, %v576
    %v658 = vpack.c.b16 %v579, %v578
    %v659 = vpack.c.b16 %v581, %v580
    %v660 = vpack.c.b16 %v583, %v582
    %v661 = vpack.c.b16 %v585, %v584
    %v662 = vpack.c.b16 %v587, %v586
    %v663 = vpack.c.b16 %v589, %v588
    %v664 = vpack.c.b16 %v591, %v590
    %v665 = vpack.c.b16 %v593, %v592
    %v666 = vpack.c.b16 %v595, %v594
    %v667 = vpack.c.b16 %v597, %v596
    %v668 = vpack.c.b16 %v599, %v598
    %v669 = vpack.c.b16 %v601, %v600
    %v670 = vpack.c.b16 %v603, %v602
    %v671 = vpack.c.b16 %v605, %v604
    %v672 = vpack.c.b16 %v607, %v606
    %v673 = vpack.c.b16 %v609, %v608
    %738 = vmatprep.subr.bf16.mxu0 0
    %739 = vmatpush1.bf16.msra.mxu0 %v617
    %740 = vmatprep.subr.bf16.mxu0 0
    %741 = vmatpush1.bf16.msra.mxu0 %v616
    %742 = vmatprep.subr.bf16.mxu0 0
    %743 = vmatpush1.bf16.msra.mxu0 %v615
    %744 = vmatprep.subr.bf16.mxu0 0
    %745 = vmatpush1.bf16.msra.mxu0 %v614
    %746 = vmatprep.subr.bf16.mxu0 0
    %747 = vmatpush1.bf16.msra.mxu0 %v613
    %748 = vmatprep.subr.bf16.mxu0 0
    %749 = vmatpush1.bf16.msra.mxu0 %v612
    %750 = vmatprep.subr.bf16.mxu0 0
    %751 = vmatpush1.bf16.msra.mxu0 %v611
    %752 = vmatprep.subr.bf16.mxu0 0
    %753 = vmatpush1.bf16.msra.mxu0 %v610
    %754 = vmatprep.subr.bf16.mxu0 0
    %755 = vmatpush2.bf16.msra.mxu0 %v625
    %756 = vmatprep.subr.bf16.mxu0 0
    %757 = vmatpush2.bf16.msra.mxu0 %v624
    %758 = vmatprep.subr.bf16.mxu0 0
    %759 = vmatpush2.bf16.msra.mxu0 %v623
    %760 = vmatprep.subr.bf16.mxu0 0
    %761 = vmatpush2.bf16.msra.mxu0 %v622
    %762 = vmatprep.subr.bf16.mxu0 0
    %763 = vmatpush2.bf16.msra.mxu0 %v621
    %764 = vmatprep.subr.bf16.mxu0 0
    %765 = vmatpush2.bf16.msra.mxu0 %v620
    %766 = vmatprep.subr.bf16.mxu0 0
    %767 = vmatpush2.bf16.msra.mxu0 %v619
    %768 = vmatprep.subr.bf16.mxu0 0
    %769 = vmatpush2.bf16.msra.mxu0 %v618
    %770 = vmatprep.mubr.bf16.mxu0 %v343
    %771 = vmatmul.mubr.bf16.gmra.mxu0 %v342
    %v772 = vpop.f32.mrf.mxu0
    %v773 = vadd.f32 %v353, %v772
    %v774 = vpop.f32.mrf.mxu0
    %v775 = vpop.f32.mrf.mxu0
    %v776 = vadd.f32 %v353, %v775
    %v777 = vpop.f32.mrf.mxu0
    %778 = vdwg.mxu0
    %779 = vmatprep.subr.bf16.mxu0 0
    %780 = vmatpush1.bf16.msra.mxu0 %v633
    %781 = vmatprep.subr.bf16.mxu0 0
    %782 = vmatpush1.bf16.msra.mxu0 %v632
    %783 = vmatprep.subr.bf16.mxu0 0
    %784 = vmatpush1.bf16.msra.mxu0 %v631
    %785 = vmatprep.subr.bf16.mxu0 0
    %786 = vmatpush1.bf16.msra.mxu0 %v630
    %787 = vmatprep.subr.bf16.mxu0 0
    %788 = vmatpush1.bf16.msra.mxu0 %v629
    %789 = vmatprep.subr.bf16.mxu0 0
    %790 = vmatpush1.bf16.msra.mxu0 %v628
    %791 = vmatprep.subr.bf16.mxu0 0
    %792 = vmatpush1.bf16.msra.mxu0 %v627
    %793 = vmatprep.subr.bf16.mxu0 0
    %794 = vmatpush1.bf16.msra.mxu0 %v626
    %795 = vmatprep.subr.bf16.mxu0 0
    %796 = vmatpush2.bf16.msra.mxu0 %v641
    %797 = vmatprep.subr.bf16.mxu0 0
    %798 = vmatpush2.bf16.msra.mxu0 %v640
    %799 = vmatprep.subr.bf16.mxu0 0
    %800 = vmatpush2.bf16.msra.mxu0 %v639
    %801 = vmatprep.subr.bf16.mxu0 0
    %802 = vmatpush2.bf16.msra.mxu0 %v638
    %803 = vmatprep.subr.bf16.mxu0 0
    %804 = vmatpush2.bf16.msra.mxu0 %v637
    %805 = vmatprep.subr.bf16.mxu0 0
    %806 = vmatpush2.bf16.msra.mxu0 %v636
    %807 = vmatprep.subr.bf16.mxu0 0
    %808 = vmatpush2.bf16.msra.mxu0 %v635
    %809 = vmatprep.subr.bf16.mxu0 0
    %810 = vmatpush2.bf16.msra.mxu0 %v634
    %811 = vmatprep.mubr.bf16.mxu0 %v345
    %812 = vmatmul.mubr.bf16.gmra.mxu0 %v344
    %v813 = vpop.f32.mrf.mxu0
    %v814 = vadd.f32 %v773, %v813
    %v815 = vpop.f32.mrf.mxu0
    %v816 = vpop.f32.mrf.mxu0
    %v817 = vadd.f32 %v776, %v816
    %v818 = vpop.f32.mrf.mxu0
    %819 = vdwg.mxu0
    %820 = vmatprep.subr.bf16.mxu0 0
    %821 = vmatpush1.bf16.msra.mxu0 %v649
    %822 = vmatprep.subr.bf16.mxu0 0
    %823 = vmatpush1.bf16.msra.mxu0 %v648
    %824 = vmatprep.subr.bf16.mxu0 0
    %825 = vmatpush1.bf16.msra.mxu0 %v647
    %826 = vmatprep.subr.bf16.mxu0 0
    %827 = vmatpush1.bf16.msra.mxu0 %v646
    %828 = vmatprep.subr.bf16.mxu0 0
    %829 = vmatpush1.bf16.msra.mxu0 %v645
    %830 = vmatprep.subr.bf16.mxu0 0
    %831 = vmatpush1.bf16.msra.mxu0 %v644
    %832 = vmatprep.subr.bf16.mxu0 0
    %833 = vmatpush1.bf16.msra.mxu0 %v643
    %834 = vmatprep.subr.bf16.mxu0 0
    %835 = vmatpush1.bf16.msra.mxu0 %v642
    %836 = vmatprep.subr.bf16.mxu0 0
    %837 = vmatpush2.bf16.msra.mxu0 %v657
    %838 = vmatprep.subr.bf16.mxu0 0
    %839 = vmatpush2.bf16.msra.mxu0 %v656
    %840 = vmatprep.subr.bf16.mxu0 0
    %841 = vmatpush2.bf16.msra.mxu0 %v655
    %842 = vmatprep.subr.bf16.mxu0 0
    %843 = vmatpush2.bf16.msra.mxu0 %v654
    %844 = vmatprep.subr.bf16.mxu0 0
    %845 = vmatpush2.bf16.msra.mxu0 %v653
    %846 = vmatprep.subr.bf16.mxu0 0
    %847 = vmatpush2.bf16.msra.mxu0 %v652
    %848 = vmatprep.subr.bf16.mxu0 0
    %849 = vmatpush2.bf16.msra.mxu0 %v651
    %850 = vmatprep.subr.bf16.mxu0 0
    %851 = vmatpush2.bf16.msra.mxu0 %v650
    %852 = vmatprep.mubr.bf16.mxu0 %v347
    %853 = vmatmul.mubr.bf16.gmra.mxu0 %v346
    %v854 = vpop.f32.mrf.mxu0
    %v855 = vadd.f32 %v814, %v854
    %v856 = vpop.f32.mrf.mxu0
    %v857 = vpop.f32.mrf.mxu0
    %v858 = vadd.f32 %v817, %v857
    %v859 = vpop.f32.mrf.mxu0
    %860 = vdwg.mxu0
    %861 = vmatprep.subr.bf16.mxu0 0
    %862 = vmatpush1.bf16.msra.mxu0 %v665
    %863 = vmatprep.subr.bf16.mxu0 0
    %864 = vmatpush1.bf16.msra.mxu0 %v664
    %865 = vmatprep.subr.bf16.mxu0 0
    %866 = vmatpush1.bf16.msra.mxu0 %v663
    %867 = vmatprep.subr.bf16.mxu0 0
    %868 = vmatpush1.bf16.msra.mxu0 %v662
    %869 = vmatprep.subr.bf16.mxu0 0
    %870 = vmatpush1.bf16.msra.mxu0 %v661
    %871 = vmatprep.subr.bf16.mxu0 0
    %872 = vmatpush1.bf16.msra.mxu0 %v660
    %873 = vmatprep.subr.bf16.mxu0 0
    %874 = vmatpush1.bf16.msra.mxu0 %v659
    %875 = vmatprep.subr.bf16.mxu0 0
    %876 = vmatpush1.bf16.msra.mxu0 %v658
    %877 = vmatprep.subr.bf16.mxu0 0
    %878 = vmatpush2.bf16.msra.mxu0 %v673
    %879 = vmatprep.subr.bf16.mxu0 0
    %880 = vmatpush2.bf16.msra.mxu0 %v672
    %881 = vmatprep.subr.bf16.mxu0 0
    %882 = vmatpush2.bf16.msra.mxu0 %v671
    %883 = vmatprep.subr.bf16.mxu0 0
    %884 = vmatpush2.bf16.msra.mxu0 %v670
    %885 = vmatprep.subr.bf16.mxu0 0
    %886 = vmatpush2.bf16.msra.mxu0 %v669
    %887 = vmatprep.subr.bf16.mxu0 0
    %888 = vmatpush2.bf16.msra.mxu0 %v668
    %889 = vmatprep.subr.bf16.mxu0 0
    %890 = vmatpush2.bf16.msra.mxu0 %v667
    %891 = vmatprep.subr.bf16.mxu0 0
    %892 = vmatpush2.bf16.msra.mxu0 %v666
    %893 = vmatprep.mubr.bf16.mxu0 %v349
    %894 = vmatmul.mubr.bf16.gmra.mxu0 %v348
    %v895 = vpop.f32.mrf.mxu0
    %v896 = vadd.f32 %v855, %v895
    %v897 = vpop.f32.mrf.mxu0
    %v898 = vpop.f32.mrf.mxu0
    %v899 = vadd.f32 %v858, %v898
    %v900 = vpop.f32.mrf.mxu0
    %901 = vdwg.mxu0
    %v902 = vpack.c.bf16 %v899, %v896
    %v903 = vlaneseq
    %v904 = vshrl.u32 %v903, 7
    %v905 = vsub.s32 1, %v904
    %v906 = vrot.slane %v66, %v905
    %v907 = vlaneseq
    %v908 = vshrl.u32 %v907, 7
    %v909 = vsub.s32 1, %v908
    %v910 = vrot.slane %v67, %v909
    %v927 = vunpack.c.l.b16 %v70
    %v928 = vunpack.c.h.b16 %v70
    %v929 = vunpack.c.l.b16 %v72
    %v930 = vunpack.c.h.b16 %v72
    %v931 = vunpack.c.l.b16 %v74
    %v932 = vunpack.c.h.b16 %v74
    %v933 = vunpack.c.l.b16 %v76
    %v934 = vunpack.c.h.b16 %v76
    %v935 = vunpack.c.l.b16 %v78
    %v936 = vunpack.c.h.b16 %v78
    %v937 = vunpack.c.l.b16 %v80
    %v938 = vunpack.c.h.b16 %v80
    %v939 = vunpack.c.l.b16 %v82
    %v940 = vunpack.c.h.b16 %v82
    %v941 = vunpack.c.l.b16 %v84
    %v942 = vunpack.c.h.b16 %v84
    %v943 = vunpack.c.l.b16 %v86
    %v944 = vunpack.c.h.b16 %v86
    %v945 = vunpack.c.l.b16 %v88
    %v946 = vunpack.c.h.b16 %v88
    %v947 = vunpack.c.l.b16 %v90
    %v948 = vunpack.c.h.b16 %v90
    %v949 = vunpack.c.l.b16 %v92
    %v950 = vunpack.c.h.b16 %v92
    %v951 = vunpack.c.l.b16 %v94
    %v952 = vunpack.c.h.b16 %v94
    %v953 = vunpack.c.l.b16 %v96
    %v954 = vunpack.c.h.b16 %v96
    %v955 = vunpack.c.l.b16 %v98
    %v956 = vunpack.c.h.b16 %v98
    %v957 = vunpack.c.l.b16 %v100
    %v958 = vunpack.c.h.b16 %v100
    %v959 = vpack.c.b16 %v929, %v927
    %v960 = vpack.c.b16 %v930, %v928
    %v961 = vpack.c.b16 %v933, %v931
    %v962 = vpack.c.b16 %v934, %v932
    %v963 = vpack.c.b16 %v937, %v935
    %v964 = vpack.c.b16 %v938, %v936
    %v965 = vpack.c.b16 %v941, %v939
    %v966 = vpack.c.b16 %v942, %v940
    %v967 = vpack.c.b16 %v945, %v943
    %v968 = vpack.c.b16 %v946, %v944
    %v969 = vpack.c.b16 %v949, %v947
    %v970 = vpack.c.b16 %v950, %v948
    %v971 = vpack.c.b16 %v953, %v951
    %v972 = vpack.c.b16 %v954, %v952
    %v973 = vpack.c.b16 %v957, %v955
    %v974 = vpack.c.b16 %v958, %v956
    %991 = vmatprep.subr.bf16.mxu0 %v974
    %992 = vmatpush1.bf16.msra.mxu0 %v973
    %993 = vmatprep.subr.bf16.mxu0 %v972
    %994 = vmatpush1.bf16.msra.mxu0 %v971
    %995 = vmatprep.subr.bf16.mxu0 %v970
    %996 = vmatpush1.bf16.msra.mxu0 %v969
    %997 = vmatprep.subr.bf16.mxu0 %v968
    %998 = vmatpush1.bf16.msra.mxu0 %v967
    %999 = vmatprep.subr.bf16.mxu0 %v966
    %1000 = vmatpush1.bf16.msra.mxu0 %v965
    %1001 = vmatprep.subr.bf16.mxu0 %v964
    %1002 = vmatpush1.bf16.msra.mxu0 %v963
    %1003 = vmatprep.subr.bf16.mxu0 %v962
    %1004 = vmatpush1.bf16.msra.mxu0 %v961
    %1005 = vmatprep.subr.bf16.mxu0 %v960
    %1006 = vmatpush1.bf16.msra.mxu0 %v959
    %1007 = vmatprep.subr.bf16.mxu0 0
    %1008 = vmatpush2.bf16.msra.mxu0 0
    %1009 = vmatprep.subr.bf16.mxu0 0
    %1010 = vmatpush2.bf16.msra.mxu0 0
    %1011 = vmatprep.subr.bf16.mxu0 0
    %1012 = vmatpush2.bf16.msra.mxu0 0
    %1013 = vmatprep.subr.bf16.mxu0 0
    %1014 = vmatpush2.bf16.msra.mxu0 0
    %1015 = vmatprep.subr.bf16.mxu0 0
    %1016 = vmatpush2.bf16.msra.mxu0 0
    %1017 = vmatprep.subr.bf16.mxu0 0
    %1018 = vmatpush2.bf16.msra.mxu0 0
    %1019 = vmatprep.subr.bf16.mxu0 0
    %1020 = vmatpush2.bf16.msra.mxu0 0
    %1021 = vmatprep.subr.bf16.mxu0 0
    %1022 = vmatpush2.bf16.msra.mxu0 0
    %1023 = vmatprep.mubr.bf16.mxu0 0
    %1024 = vmatmul.mubr.bf16.gmra.mxu0 %v902
    %v1025 = vpop.f32.mrf.mxu0
    %v1026 = vadd.f32 %v906, %v1025
    %v1027 = vpop.f32.mrf.mxu0
    %v1028 = vadd.f32 %v910, %v1027
    %v1029 = vpop.f32.mrf.mxu0
    %v1030 = vadd.f32 %v906, %v1029
    %v1031 = vpop.f32.mrf.mxu0
    %v1032 = vadd.f32 %v910, %v1031
    %1033 = vdwg.mxu0
    %v1034 = vrot.slane %v1026, 4
    %v1035 = vadd.f32 %v1026, %v1034
    %v1036 = vrot.slane %v1035, 2
    %v1037 = vadd.f32 %v1035, %v1036
    %v1038 = vrot.slane %v1037, 1
    %v1039 = vadd.f32 %v1037, %v1038
    %v1040 = vrot.slane %v1028, 4
    %v1041 = vadd.f32 %v1028, %v1040
    %v1042 = vrot.slane %v1041, 2
    %v1043 = vadd.f32 %v1041, %v1042
    %v1044 = vrot.slane %v1043, 1
    %v1045 = vadd.f32 %v1043, %v1044
    %v1046 = vrot.slane %v1030, 4
    %v1047 = vadd.f32 %v1030, %v1046
    %v1048 = vrot.slane %v1047, 2
    %v1049 = vadd.f32 %v1047, %v1048
    %v1050 = vrot.slane %v1049, 1
    %v1051 = vadd.f32 %v1049, %v1050
    %v1052 = vrot.slane %v1032, 4
    %v1053 = vadd.f32 %v1032, %v1052
    %v1054 = vrot.slane %v1053, 2
    %v1055 = vadd.f32 %v1053, %v1054
    %v1056 = vrot.slane %v1055, 1
    %v1057 = vadd.f32 %v1055, %v1056
    %v1058 = vrcp.pop 8.0
    %v1059 = vmul.f32 %v1039, %v1058
    %v1060 = vmul.f32 %v1045, %v1058
    %v1061 = vmul.f32 %v1051, %v1058
    %v1062 = vmul.f32 %v1057, %v1058
    %v1063 = vsub.f32 %v1026, %v1059
    %v1064 = vsub.f32 %v1028, %v1060
    %v1065 = vsub.f32 %v1030, %v1061
    %v1066 = vsub.f32 %v1032, %v1062
    %v1067 = vmul.f32 %v1063, %v1063
    %v1068 = vmul.f32 %v1064, %v1064
    %v1069 = vmul.f32 %v1065, %v1065
    %v1070 = vmul.f32 %v1066, %v1066
    %v1071 = vrot.slane %v1067, 4
    %v1072 = vadd.f32 %v1067, %v1071
    %v1073 = vrot.slane %v1072, 2
    %v1074 = vadd.f32 %v1072, %v1073
    %v1075 = vrot.slane %v1074, 1
    %v1076 = vadd.f32 %v1074, %v1075
    %v1077 = vrot.slane %v1068, 4
    %v1078 = vadd.f32 %v1068, %v1077
    %v1079 = vrot.slane %v1078, 2
    %v1080 = vadd.f32 %v1078, %v1079
    %v1081 = vrot.slane %v1080, 1
    %v1082 = vadd.f32 %v1080, %v1081
    %v1083 = vrot.slane %v1069, 4
    %v1084 = vadd.f32 %v1069, %v1083
    %v1085 = vrot.slane %v1084, 2
    %v1086 = vadd.f32 %v1084, %v1085
    %v1087 = vrot.slane %v1086, 1
    %v1088 = vadd.f32 %v1086, %v1087
    %v1089 = vrot.slane %v1070, 4
    %v1090 = vadd.f32 %v1070, %v1089
    %v1091 = vrot.slane %v1090, 2
    %v1092 = vadd.f32 %v1090, %v1091
    %v1093 = vrot.slane %v1092, 1
    %v1094 = vadd.f32 %v1092, %v1093
    %v1095 = vmul.f32 %v1076, %v1058
    %v1096 = vmul.f32 %v1082, %v1058
    %v1097 = vmul.f32 %v1088, %v1058
    %v1098 = vmul.f32 %v1094, %v1058
    %v1099 = vadd.f32 %v1095, 1e-05
    %v1100 = vadd.f32 %v1096, 1e-05
    %v1101 = vadd.f32 %v1097, 1e-05
    %v1102 = vadd.f32 %v1098, 1e-05
    %v1103 = vrsqrt.pop %v1099
    %v1104 = vrsqrt.pop %v1100
    %v1105 = vrsqrt.pop %v1101
    %v1106 = vrsqrt.pop %v1102
    %v1107 = vmul.f32 %v1063, %v1103
    %v1108 = vmul.f32 %v1064, %v1104
    %v1109 = vmul.f32 %v1065, %v1105
    %v1110 = vmul.f32 %v1066, %v1106
    %v1111 = vlaneseq
    %v1112 = vshrl.u32 %v1111, 7
    %v1113 = vsub.s32 2, %v1112
    %v1114 = vrot.slane %v66, %v1113
    %v1115 = vlaneseq
    %v1116 = vshrl.u32 %v1115, 7
    %v1117 = vsub.s32 2, %v1116
    %v1118 = vrot.slane %v67, %v1117
    %v1119 = vmul.f32 %v1107, %v1114
    %v1120 = vmul.f32 %v1108, %v1118
    %v1121 = vmul.f32 %v1109, %v1114
    %v1122 = vmul.f32 %v1110, %v1118
    %v1123 = vlaneseq
    %v1124 = vshrl.u32 %v1123, 7
    %v1125 = vsub.s32 3, %v1124
    %v1126 = vrot.slane %v66, %v1125
    %v1127 = vlaneseq
    %v1128 = vshrl.u32 %v1127, 7
    %v1129 = vsub.s32 3, %v1128
    %v1130 = vrot.slane %v67, %v1129
    %v1131 = vadd.f32 %v1119, %v1126
    %v1132 = vadd.f32 %v1120, %v1130
    %v1133 = vadd.f32 %v1121, %v1126
    %v1134 = vadd.f32 %v1122, %v1130
    %v1135 = vmax.f32 %v1131, 0.0
    %v1136 = vmax.f32 %v1132, 0.0
    %v1137 = vmax.f32 %v1133, 0.0
    %v1138 = vmax.f32 %v1134, 0.0
    %v1139 = vpack.c.bf16 %v1137, %v1135
    %v1140 = vpack.c.bf16 %v1138, %v1136
    %v1141 = vlaneseq
    %v1142 = vshrl.u32 %v1141, 7
    %v1143 = vsub.s32 4, %v1142
    %v1144 = vrot.slane %v66, %v1143
    %v1145 = vlaneseq
    %v1146 = vshrl.u32 %v1145, 7
    %v1147 = vsub.s32 4, %v1146
    %v1148 = vrot.slane %v67, %v1147
    %v1181 = vunpack.c.l.b16 %v102
    %v1182 = vunpack.c.h.b16 %v102
    %v1183 = vunpack.c.l.b16 %v105
    %v1184 = vunpack.c.h.b16 %v105
    %v1185 = vunpack.c.l.b16 %v108
    %v1186 = vunpack.c.h.b16 %v108
    %v1187 = vunpack.c.l.b16 %v111
    %v1188 = vunpack.c.h.b16 %v111
    %v1189 = vunpack.c.l.b16 %v114
    %v1190 = vunpack.c.h.b16 %v114
    %v1191 = vunpack.c.l.b16 %v117
    %v1192 = vunpack.c.h.b16 %v117
    %v1193 = vunpack.c.l.b16 %v120
    %v1194 = vunpack.c.h.b16 %v120
    %v1195 = vunpack.c.l.b16 %v123
    %v1196 = vunpack.c.h.b16 %v123
    %v1197 = vunpack.c.l.b16 %v126
    %v1198 = vunpack.c.h.b16 %v126
    %v1199 = vunpack.c.l.b16 %v129
    %v1200 = vunpack.c.h.b16 %v129
    %v1201 = vunpack.c.l.b16 %v132
    %v1202 = vunpack.c.h.b16 %v132
    %v1203 = vunpack.c.l.b16 %v135
    %v1204 = vunpack.c.h.b16 %v135
    %v1205 = vunpack.c.l.b16 %v138
    %v1206 = vunpack.c.h.b16 %v138
    %v1207 = vunpack.c.l.b16 %v141
    %v1208 = vunpack.c.h.b16 %v141
    %v1209 = vunpack.c.l.b16 %v144
    %v1210 = vunpack.c.h.b16 %v144
    %v1211 = vunpack.c.l.b16 %v147
    %v1212 = vunpack.c.h.b16 %v147
    %v1213 = vunpack.c.l.b16 %v150
    %v1214 = vunpack.c.h.b16 %v150
    %v1215 = vunpack.c.l.b16 %v153
    %v1216 = vunpack.c.h.b16 %v153
    %v1217 = vunpack.c.l.b16 %v156
    %v1218 = vunpack.c.h.b16 %v156
    %v1219 = vunpack.c.l.b16 %v159
    %v1220 = vunpack.c.h.b16 %v159
    %v1221 = vunpack.c.l.b16 %v162
    %v1222 = vunpack.c.h.b16 %v162
    %v1223 = vunpack.c.l.b16 %v165
    %v1224 = vunpack.c.h.b16 %v165
    %v1225 = vunpack.c.l.b16 %v168
    %v1226 = vunpack.c.h.b16 %v168
    %v1227 = vunpack.c.l.b16 %v171
    %v1228 = vunpack.c.h.b16 %v171
    %v1229 = vunpack.c.l.b16 %v174
    %v1230 = vunpack.c.h.b16 %v174
    %v1231 = vunpack.c.l.b16 %v177
    %v1232 = vunpack.c.h.b16 %v177
    %v1233 = vunpack.c.l.b16 %v180
    %v1234 = vunpack.c.h.b16 %v180
    %v1235 = vunpack.c.l.b16 %v183
    %v1236 = vunpack.c.h.b16 %v183
    %v1237 = vunpack.c.l.b16 %v186
    %v1238 = vunpack.c.h.b16 %v186
    %v1239 = vunpack.c.l.b16 %v189
    %v1240 = vunpack.c.h.b16 %v189
    %v1241 = vunpack.c.l.b16 %v192
    %v1242 = vunpack.c.h.b16 %v192
    %v1243 = vunpack.c.l.b16 %v195
    %v1244 = vunpack.c.h.b16 %v195
    %v1245 = vpack.c.b16 %v1183, %v1181
    %v1246 = vpack.c.b16 %v1184, %v1182
    %v1247 = vpack.c.b16 %v1187, %v1185
    %v1248 = vpack.c.b16 %v1188, %v1186
    %v1249 = vpack.c.b16 %v1191, %v1189
    %v1250 = vpack.c.b16 %v1192, %v1190
    %v1251 = vpack.c.b16 %v1195, %v1193
    %v1252 = vpack.c.b16 %v1196, %v1194
    %v1253 = vpack.c.b16 %v1199, %v1197
    %v1254 = vpack.c.b16 %v1200, %v1198
    %v1255 = vpack.c.b16 %v1203, %v1201
    %v1256 = vpack.c.b16 %v1204, %v1202
    %v1257 = vpack.c.b16 %v1207, %v1205
    %v1258 = vpack.c.b16 %v1208, %v1206
    %v1259 = vpack.c.b16 %v1211, %v1209
    %v1260 = vpack.c.b16 %v1212, %v1210
    %v1261 = vpack.c.b16 %v1215, %v1213
    %v1262 = vpack.c.b16 %v1216, %v1214
    %v1263 = vpack.c.b16 %v1219, %v1217
    %v1264 = vpack.c.b16 %v1220, %v1218
    %v1265 = vpack.c.b16 %v1223, %v1221
    %v1266 = vpack.c.b16 %v1224, %v1222
    %v1267 = vpack.c.b16 %v1227, %v1225
    %v1268 = vpack.c.b16 %v1228, %v1226
    %v1269 = vpack.c.b16 %v1231, %v1229
    %v1270 = vpack.c.b16 %v1232, %v1230
    %v1271 = vpack.c.b16 %v1235, %v1233
    %v1272 = vpack.c.b16 %v1236, %v1234
    %v1273 = vpack.c.b16 %v1239, %v1237
    %v1274 = vpack.c.b16 %v1240, %v1238
    %v1275 = vpack.c.b16 %v1243, %v1241
    %v1276 = vpack.c.b16 %v1244, %v1242
    %1309 = vmatprep.subr.bf16.mxu0 %v1260
    %1310 = vmatpush1.bf16.msra.mxu0 %v1259
    %1311 = vmatprep.subr.bf16.mxu0 %v1258
    %1312 = vmatpush1.bf16.msra.mxu0 %v1257
    %1313 = vmatprep.subr.bf16.mxu0 %v1256
    %1314 = vmatpush1.bf16.msra.mxu0 %v1255
    %1315 = vmatprep.subr.bf16.mxu0 %v1254
    %1316 = vmatpush1.bf16.msra.mxu0 %v1253
    %1317 = vmatprep.subr.bf16.mxu0 %v1252
    %1318 = vmatpush1.bf16.msra.mxu0 %v1251
    %1319 = vmatprep.subr.bf16.mxu0 %v1250
    %1320 = vmatpush1.bf16.msra.mxu0 %v1249
    %1321 = vmatprep.subr.bf16.mxu0 %v1248
    %1322 = vmatpush1.bf16.msra.mxu0 %v1247
    %1323 = vmatprep.subr.bf16.mxu0 %v1246
    %1324 = vmatpush1.bf16.msra.mxu0 %v1245
    %1325 = vmatprep.subr.bf16.mxu0 %v1276
    %1326 = vmatpush2.bf16.msra.mxu0 %v1275
    %1327 = vmatprep.subr.bf16.mxu0 %v1274
    %1328 = vmatpush2.bf16.msra.mxu0 %v1273
    %1329 = vmatprep.subr.bf16.mxu0 %v1272
    %1330 = vmatpush2.bf16.msra.mxu0 %v1271
    %1331 = vmatprep.subr.bf16.mxu0 %v1270
    %1332 = vmatpush2.bf16.msra.mxu0 %v1269
    %1333 = vmatprep.subr.bf16.mxu0 %v1268
    %1334 = vmatpush2.bf16.msra.mxu0 %v1267
    %1335 = vmatprep.subr.bf16.mxu0 %v1266
    %1336 = vmatpush2.bf16.msra.mxu0 %v1265
    %1337 = vmatprep.subr.bf16.mxu0 %v1264
    %1338 = vmatpush2.bf16.msra.mxu0 %v1263
    %1339 = vmatprep.subr.bf16.mxu0 %v1262
    %1340 = vmatpush2.bf16.msra.mxu0 %v1261
    %1341 = vmatprep.mubr.bf16.mxu0 %v1140
    %1342 = vmatmul.mubr.bf16.gmra.mxu0 %v1139
    %v1343 = vpop.f32.mrf.mxu0
    %v1344 = vadd.f32 %v1144, %v1343
    %v1345 = vpop.f32.mrf.mxu0
    %v1346 = vadd.f32 %v1148, %v1345
    %v1347 = vpop.f32.mrf.mxu0
    %v1348 = vadd.f32 %v1144, %v1347
    %v1349 = vpop.f32.mrf.mxu0
    %v1350 = vadd.f32 %v1148, %v1349
    %1351 = vdwg.mxu0
    %v1352 = vrot.slane %v1344, 4
    %v1353 = vadd.f32 %v1344, %v1352
    %v1354 = vrot.slane %v1353, 2
    %v1355 = vadd.f32 %v1353, %v1354
    %v1356 = vrot.slane %v1355, 1
    %v1357 = vadd.f32 %v1355, %v1356
    %v1358 = vrot.slane %v1346, 4
    %v1359 = vadd.f32 %v1346, %v1358
    %v1360 = vrot.slane %v1359, 2
    %v1361 = vadd.f32 %v1359, %v1360
    %v1362 = vrot.slane %v1361, 1
    %v1363 = vadd.f32 %v1361, %v1362
    %v1364 = vrot.slane %v1348, 4
    %v1365 = vadd.f32 %v1348, %v1364
    %v1366 = vrot.slane %v1365, 2
    %v1367 = vadd.f32 %v1365, %v1366
    %v1368 = vrot.slane %v1367, 1
    %v1369 = vadd.f32 %v1367, %v1368
    %v1370 = vrot.slane %v1350, 4
    %v1371 = vadd.f32 %v1350, %v1370
    %v1372 = vrot.slane %v1371, 2
    %v1373 = vadd.f32 %v1371, %v1372
    %v1374 = vrot.slane %v1373, 1
    %v1375 = vadd.f32 %v1373, %v1374
    %v1376 = vmul.f32 %v1357, %v1058
    %v1377 = vmul.f32 %v1363, %v1058
    %v1378 = vmul.f32 %v1369, %v1058
    %v1379 = vmul.f32 %v1375, %v1058
    %v1380 = vsub.f32 %v1344, %v1376
    %v1381 = vsub.f32 %v1346, %v1377
    %v1382 = vsub.f32 %v1348, %v1378
    %v1383 = vsub.f32 %v1350, %v1379
    %v1384 = vmul.f32 %v1380, %v1380
    %v1385 = vmul.f32 %v1381, %v1381
    %v1386 = vmul.f32 %v1382, %v1382
    %v1387 = vmul.f32 %v1383, %v1383
    %v1388 = vrot.slane %v1384, 4
    %v1389 = vadd.f32 %v1384, %v1388
    %v1390 = vrot.slane %v1389, 2
    %v1391 = vadd.f32 %v1389, %v1390
    %v1392 = vrot.slane %v1391, 1
    %v1393 = vadd.f32 %v1391, %v1392
    %v1394 = vrot.slane %v1385, 4
    %v1395 = vadd.f32 %v1385, %v1394
    %v1396 = vrot.slane %v1395, 2
    %v1397 = vadd.f32 %v1395, %v1396
    %v1398 = vrot.slane %v1397, 1
    %v1399 = vadd.f32 %v1397, %v1398
    %v1400 = vrot.slane %v1386, 4
    %v1401 = vadd.f32 %v1386, %v1400
    %v1402 = vrot.slane %v1401, 2
    %v1403 = vadd.f32 %v1401, %v1402
    %v1404 = vrot.slane %v1403, 1
    %v1405 = vadd.f32 %v1403, %v1404
    %v1406 = vrot.slane %v1387, 4
    %v1407 = vadd.f32 %v1387, %v1406
    %v1408 = vrot.slane %v1407, 2
    %v1409 = vadd.f32 %v1407, %v1408
    %v1410 = vrot.slane %v1409, 1
    %v1411 = vadd.f32 %v1409, %v1410
    %v1412 = vmul.f32 %v1393, %v1058
    %v1413 = vmul.f32 %v1399, %v1058
    %v1414 = vmul.f32 %v1405, %v1058
    %v1415 = vmul.f32 %v1411, %v1058
    %v1416 = vadd.f32 %v1412, 1e-05
    %v1417 = vadd.f32 %v1413, 1e-05
    %v1418 = vadd.f32 %v1414, 1e-05
    %v1419 = vadd.f32 %v1415, 1e-05
    %v1420 = vrsqrt.pop %v1416
    %v1421 = vrsqrt.pop %v1417
    %v1422 = vrsqrt.pop %v1418
    %v1423 = vrsqrt.pop %v1419
    %v1424 = vmul.f32 %v1380, %v1420
    %v1425 = vmul.f32 %v1381, %v1421
    %v1426 = vmul.f32 %v1382, %v1422
    %v1427 = vmul.f32 %v1383, %v1423
    %v1428 = vlaneseq
    %v1429 = vshrl.u32 %v1428, 7
    %v1430 = vsub.s32 5, %v1429
    %v1431 = vrot.slane %v66, %v1430
    %v1432 = vlaneseq
    %v1433 = vshrl.u32 %v1432, 7
    %v1434 = vsub.s32 5, %v1433
    %v1435 = vrot.slane %v67, %v1434
    %v1436 = vmul.f32 %v1424, %v1431
    %v1437 = vmul.f32 %v1425, %v1435
    %v1438 = vmul.f32 %v1426, %v1431
    %v1439 = vmul.f32 %v1427, %v1435
    %v1440 = vlaneseq
    %v1441 = vshrl.u32 %v1440, 7
    %v1442 = vsub.s32 6, %v1441
    %v1443 = vrot.slane %v66, %v1442
    %v1444 = vlaneseq
    %v1445 = vshrl.u32 %v1444, 7
    %v1446 = vsub.s32 6, %v1445
    %v1447 = vrot.slane %v67, %v1446
    %v1448 = vadd.f32 %v1436, %v1443
    %v1449 = vadd.f32 %v1437, %v1447
    %v1450 = vadd.f32 %v1438, %v1443
    %v1451 = vadd.f32 %v1439, %v1447
    %v1452 = vmax.f32 %v1448, 0.0
    %v1453 = vmax.f32 %v1449, 0.0
    %v1454 = vmax.f32 %v1450, 0.0
    %v1455 = vmax.f32 %v1451, 0.0
    %v1456 = vpack.c.bf16 %v1454, %v1452
    %v1457 = vpack.c.bf16 %v1455, %v1453
    %v1458 = vlaneseq
    %v1459 = vshrl.u32 %v1458, 7
    %v1460 = vsub.s32 7, %v1459
    %v1461 = vrot.slane %v66, %v1460
    %v1462 = vlaneseq
    %v1463 = vshrl.u32 %v1462, 7
    %v1464 = vsub.s32 7, %v1463
    %v1465 = vrot.slane %v67, %v1464
    %v1498 = vunpack.c.l.b16 %v103
    %v1499 = vunpack.c.h.b16 %v103
    %v1500 = vunpack.c.l.b16 %v106
    %v1501 = vunpack.c.h.b16 %v106
    %v1502 = vunpack.c.l.b16 %v109
    %v1503 = vunpack.c.h.b16 %v109
    %v1504 = vunpack.c.l.b16 %v112
    %v1505 = vunpack.c.h.b16 %v112
    %v1506 = vunpack.c.l.b16 %v115
    %v1507 = vunpack.c.h.b16 %v115
    %v1508 = vunpack.c.l.b16 %v118
    %v1509 = vunpack.c.h.b16 %v118
    %v1510 = vunpack.c.l.b16 %v121
    %v1511 = vunpack.c.h.b16 %v121
    %v1512 = vunpack.c.l.b16 %v124
    %v1513 = vunpack.c.h.b16 %v124
    %v1514 = vunpack.c.l.b16 %v127
    %v1515 = vunpack.c.h.b16 %v127
    %v1516 = vunpack.c.l.b16 %v130
    %v1517 = vunpack.c.h.b16 %v130
    %v1518 = vunpack.c.l.b16 %v133
    %v1519 = vunpack.c.h.b16 %v133
    %v1520 = vunpack.c.l.b16 %v136
    %v1521 = vunpack.c.h.b16 %v136
    %v1522 = vunpack.c.l.b16 %v139
    %v1523 = vunpack.c.h.b16 %v139
    %v1524 = vunpack.c.l.b16 %v142
    %v1525 = vunpack.c.h.b16 %v142
    %v1526 = vunpack.c.l.b16 %v145
    %v1527 = vunpack.c.h.b16 %v145
    %v1528 = vunpack.c.l.b16 %v148
    %v1529 = vunpack.c.h.b16 %v148
    %v1530 = vunpack.c.l.b16 %v151
    %v1531 = vunpack.c.h.b16 %v151
    %v1532 = vunpack.c.l.b16 %v154
    %v1533 = vunpack.c.h.b16 %v154
    %v1534 = vunpack.c.l.b16 %v157
    %v1535 = vunpack.c.h.b16 %v157
    %v1536 = vunpack.c.l.b16 %v160
    %v1537 = vunpack.c.h.b16 %v160
    %v1538 = vunpack.c.l.b16 %v163
    %v1539 = vunpack.c.h.b16 %v163
    %v1540 = vunpack.c.l.b16 %v166
    %v1541 = vunpack.c.h.b16 %v166
    %v1542 = vunpack.c.l.b16 %v169
    %v1543 = vunpack.c.h.b16 %v169
    %v1544 = vunpack.c.l.b16 %v172
    %v1545 = vunpack.c.h.b16 %v172
    %v1546 = vunpack.c.l.b16 %v175
    %v1547 = vunpack.c.h.b16 %v175
    %v1548 = vunpack.c.l.b16 %v178
    %v1549 = vunpack.c.h.b16 %v178
    %v1550 = vunpack.c.l.b16 %v181
    %v1551 = vunpack.c.h.b16 %v181
    %v1552 = vunpack.c.l.b16 %v184
    %v1553 = vunpack.c.h.b16 %v184
    %v1554 = vunpack.c.l.b16 %v187
    %v1555 = vunpack.c.h.b16 %v187
    %v1556 = vunpack.c.l.b16 %v190
    %v1557 = vunpack.c.h.b16 %v190
    %v1558 = vunpack.c.l.b16 %v193
    %v1559 = vunpack.c.h.b16 %v193
    %v1560 = vunpack.c.l.b16 %v196
    %v1561 = vunpack.c.h.b16 %v196
    %v1562 = vpack.c.b16 %v1500, %v1498
    %v1563 = vpack.c.b16 %v1501, %v1499
    %v1564 = vpack.c.b16 %v1504, %v1502
    %v1565 = vpack.c.b16 %v1505, %v1503
    %v1566 = vpack.c.b16 %v1508, %v1506
    %v1567 = vpack.c.b16 %v1509, %v1507
    %v1568 = vpack.c.b16 %v1512, %v1510
    %v1569 = vpack.c.b16 %v1513, %v1511
    %v1570 = vpack.c.b16 %v1516, %v1514
    %v1571 = vpack.c.b16 %v1517, %v1515
    %v1572 = vpack.c.b16 %v1520, %v1518
    %v1573 = vpack.c.b16 %v1521, %v1519
    %v1574 = vpack.c.b16 %v1524, %v1522
    %v1575 = vpack.c.b16 %v1525, %v1523
    %v1576 = vpack.c.b16 %v1528, %v1526
    %v1577 = vpack.c.b16 %v1529, %v1527
    %v1578 = vpack.c.b16 %v1532, %v1530
    %v1579 = vpack.c.b16 %v1533, %v1531
    %v1580 = vpack.c.b16 %v1536, %v1534
    %v1581 = vpack.c.b16 %v1537, %v1535
    %v1582 = vpack.c.b16 %v1540, %v1538
    %v1583 = vpack.c.b16 %v1541, %v1539
    %v1584 = vpack.c.b16 %v1544, %v1542
    %v1585 = vpack.c.b16 %v1545, %v1543
    %v1586 = vpack.c.b16 %v1548, %v1546
    %v1587 = vpack.c.b16 %v1549, %v1547
    %v1588 = vpack.c.b16 %v1552, %v1550
    %v1589 = vpack.c.b16 %v1553, %v1551
    %v1590 = vpack.c.b16 %v1556, %v1554
    %v1591 = vpack.c.b16 %v1557, %v1555
    %v1592 = vpack.c.b16 %v1560, %v1558
    %v1593 = vpack.c.b16 %v1561, %v1559
    %1626 = vmatprep.subr.bf16.mxu0 %v1577
    %1627 = vmatpush1.bf16.msra.mxu0 %v1576
    %1628 = vmatprep.subr.bf16.mxu0 %v1575
    %1629 = vmatpush1.bf16.msra.mxu0 %v1574
    %1630 = vmatprep.subr.bf16.mxu0 %v1573
    %1631 = vmatpush1.bf16.msra.mxu0 %v1572
    %1632 = vmatprep.subr.bf16.mxu0 %v1571
    %1633 = vmatpush1.bf16.msra.mxu0 %v1570
    %1634 = vmatprep.subr.bf16.mxu0 %v1569
    %1635 = vmatpush1.bf16.msra.mxu0 %v1568
    %1636 = vmatprep.subr.bf16.mxu0 %v1567
    %1637 = vmatpush1.bf16.msra.mxu0 %v1566
    %1638 = vmatprep.subr.bf16.mxu0 %v1565
    %1639 = vmatpush1.bf16.msra.mxu0 %v1564
    %1640 = vmatprep.subr.bf16.mxu0 %v1563
    %1641 = vmatpush1.bf16.msra.mxu0 %v1562
    %1642 = vmatprep.subr.bf16.mxu0 %v1593
    %1643 = vmatpush2.bf16.msra.mxu0 %v1592
    %1644 = vmatprep.subr.bf16.mxu0 %v1591
    %1645 = vmatpush2.bf16.msra.mxu0 %v1590
    %1646 = vmatprep.subr.bf16.mxu0 %v1589
    %1647 = vmatpush2.bf16.msra.mxu0 %v1588
    %1648 = vmatprep.subr.bf16.mxu0 %v1587
    %1649 = vmatpush2.bf16.msra.mxu0 %v1586
    %1650 = vmatprep.subr.bf16.mxu0 %v1585
    %1651 = vmatpush2.bf16.msra.mxu0 %v1584
    %1652 = vmatprep.subr.bf16.mxu0 %v1583
    %1653 = vmatpush2.bf16.msra.mxu0 %v1582
    %1654 = vmatprep.subr.bf16.mxu0 %v1581
    %1655 = vmatpush2.bf16.msra.mxu0 %v1580
    %1656 = vmatprep.subr.bf16.mxu0 %v1579
    %1657 = vmatpush2.bf16.msra.mxu0 %v1578
    %1658 = vmatprep.mubr.bf16.mxu0 %v1457
    %1659 = vmatmul.mubr.bf16.gmra.mxu0 %v1456
    %v1660 = vpop.f32.mrf.mxu0
    %v1661 = vadd.f32 %v1461, %v1660
    %v1662 = vpop.f32.mrf.mxu0
    %v1663 = vadd.f32 %v1465, %v1662
    %v1664 = vpop.f32.mrf.mxu0
    %v1665 = vadd.f32 %v1461, %v1664
    %v1666 = vpop.f32.mrf.mxu0
    %v1667 = vadd.f32 %v1465, %v1666
    %1668 = vdwg.mxu0
    %v1669 = vrot.slane %v1661, 4
    %v1670 = vadd.f32 %v1661, %v1669
    %v1671 = vrot.slane %v1670, 2
    %v1672 = vadd.f32 %v1670, %v1671
    %v1673 = vrot.slane %v1672, 1
    %v1674 = vadd.f32 %v1672, %v1673
    %v1675 = vrot.slane %v1663, 4
    %v1676 = vadd.f32 %v1663, %v1675
    %v1677 = vrot.slane %v1676, 2
    %v1678 = vadd.f32 %v1676, %v1677
    %v1679 = vrot.slane %v1678, 1
    %v1680 = vadd.f32 %v1678, %v1679
    %v1681 = vrot.slane %v1665, 4
    %v1682 = vadd.f32 %v1665, %v1681
    %v1683 = vrot.slane %v1682, 2
    %v1684 = vadd.f32 %v1682, %v1683
    %v1685 = vrot.slane %v1684, 1
    %v1686 = vadd.f32 %v1684, %v1685
    %v1687 = vrot.slane %v1667, 4
    %v1688 = vadd.f32 %v1667, %v1687
    %v1689 = vrot.slane %v1688, 2
    %v1690 = vadd.f32 %v1688, %v1689
    %v1691 = vrot.slane %v1690, 1
    %v1692 = vadd.f32 %v1690, %v1691
    %v1693 = vmul.f32 %v1674, %v1058
    %v1694 = vmul.f32 %v1680, %v1058
    %v1695 = vmul.f32 %v1686, %v1058
    %v1696 = vmul.f32 %v1692, %v1058
    %v1697 = vsub.f32 %v1661, %v1693
    %v1698 = vsub.f32 %v1663, %v1694
    %v1699 = vsub.f32 %v1665, %v1695
    %v1700 = vsub.f32 %v1667, %v1696
    %v1701 = vmul.f32 %v1697, %v1697
    %v1702 = vmul.f32 %v1698, %v1698
    %v1703 = vmul.f32 %v1699, %v1699
    %v1704 = vmul.f32 %v1700, %v1700
    %v1705 = vrot.slane %v1701, 4
    %v1706 = vadd.f32 %v1701, %v1705
    %v1707 = vrot.slane %v1706, 2
    %v1708 = vadd.f32 %v1706, %v1707
    %v1709 = vrot.slane %v1708, 1
    %v1710 = vadd.f32 %v1708, %v1709
    %v1711 = vrot.slane %v1702, 4
    %v1712 = vadd.f32 %v1702, %v1711
    %v1713 = vrot.slane %v1712, 2
    %v1714 = vadd.f32 %v1712, %v1713
    %v1715 = vrot.slane %v1714, 1
    %v1716 = vadd.f32 %v1714, %v1715
    %v1717 = vrot.slane %v1703, 4
    %v1718 = vadd.f32 %v1703, %v1717
    %v1719 = vrot.slane %v1718, 2
    %v1720 = vadd.f32 %v1718, %v1719
    %v1721 = vrot.slane %v1720, 1
    %v1722 = vadd.f32 %v1720, %v1721
    %v1723 = vrot.slane %v1704, 4
    %v1724 = vadd.f32 %v1704, %v1723
    %v1725 = vrot.slane %v1724, 2
    %v1726 = vadd.f32 %v1724, %v1725
    %v1727 = vrot.slane %v1726, 1
    %v1728 = vadd.f32 %v1726, %v1727
    %v1729 = vmul.f32 %v1710, %v1058
    %v1730 = vmul.f32 %v1716, %v1058
    %v1731 = vmul.f32 %v1722, %v1058
    %v1732 = vmul.f32 %v1728, %v1058
    %v1733 = vadd.f32 %v1729, 1e-05
    %v1734 = vadd.f32 %v1730, 1e-05
    %v1735 = vadd.f32 %v1731, 1e-05
    %v1736 = vadd.f32 %v1732, 1e-05
    %v1737 = vrsqrt.pop %v1733
    %v1738 = vrsqrt.pop %v1734
    %v1739 = vrsqrt.pop %v1735
    %v1740 = vrsqrt.pop %v1736
    %v1741 = vmul.f32 %v1697, %v1737
    %v1742 = vmul.f32 %v1698, %v1738
    %v1743 = vmul.f32 %v1699, %v1739
    %v1744 = vmul.f32 %v1700, %v1740
    %v1745 = vlaneseq
    %v1746 = vshrl.u32 %v1745, 7
    %v1747 = vsub.s32 0, %v1746
    %v1748 = vrot.slane %v68, %v1747
    %v1749 = vlaneseq
    %v1750 = vshrl.u32 %v1749, 7
    %v1751 = vsub.s32 0, %v1750
    %v1752 = vrot.slane %v69, %v1751
    %v1753 = vmul.f32 %v1741, %v1748
    %v1754 = vmul.f32 %v1742, %v1752
    %v1755 = vmul.f32 %v1743, %v1748
    %v1756 = vmul.f32 %v1744, %v1752
    %v1757 = vlaneseq
    %v1758 = vshrl.u32 %v1757, 7
    %v1759 = vsub.s32 1, %v1758
    %v1760 = vrot.slane %v68, %v1759
    %v1761 = vlaneseq
    %v1762 = vshrl.u32 %v1761, 7
    %v1763 = vsub.s32 1, %v1762
    %v1764 = vrot.slane %v69, %v1763
    %v1765 = vadd.f32 %v1753, %v1760
    %v1766 = vadd.f32 %v1754, %v1764
    %v1767 = vadd.f32 %v1755, %v1760
    %v1768 = vadd.f32 %v1756, %v1764
    %v1769 = vpack.c.bf16 %v1767, %v1765
    %v1770 = vpack.c.bf16 %v1768, %v1766
    %v1771 = vlaneseq
    %v1772 = vshrl.u32 %v1771, 7
    %v1773 = vsub.s32 2, %v1772
    %v1774 = vrot.slane %v68, %v1773
    %v1807 = vunpack.c.l.b16 %v104
    %v1808 = vunpack.c.l.b16 %v107
    %v1809 = vunpack.c.l.b16 %v110
    %v1810 = vunpack.c.l.b16 %v113
    %v1811 = vunpack.c.l.b16 %v116
    %v1812 = vunpack.c.l.b16 %v119
    %v1813 = vunpack.c.l.b16 %v122
    %v1814 = vunpack.c.l.b16 %v125
    %v1815 = vunpack.c.l.b16 %v128
    %v1816 = vunpack.c.l.b16 %v131
    %v1817 = vunpack.c.l.b16 %v134
    %v1818 = vunpack.c.l.b16 %v137
    %v1819 = vunpack.c.l.b16 %v140
    %v1820 = vunpack.c.l.b16 %v143
    %v1821 = vunpack.c.l.b16 %v146
    %v1822 = vunpack.c.l.b16 %v149
    %v1823 = vunpack.c.l.b16 %v152
    %v1824 = vunpack.c.l.b16 %v155
    %v1825 = vunpack.c.l.b16 %v158
    %v1826 = vunpack.c.l.b16 %v161
    %v1827 = vunpack.c.l.b16 %v164
    %v1828 = vunpack.c.l.b16 %v167
    %v1829 = vunpack.c.l.b16 %v170
    %v1830 = vunpack.c.l.b16 %v173
    %v1831 = vunpack.c.l.b16 %v176
    %v1832 = vunpack.c.l.b16 %v179
    %v1833 = vunpack.c.l.b16 %v182
    %v1834 = vunpack.c.l.b16 %v185
    %v1835 = vunpack.c.l.b16 %v188
    %v1836 = vunpack.c.l.b16 %v191
    %v1837 = vunpack.c.l.b16 %v194
    %v1838 = vunpack.c.l.b16 %v197
    %v1839 = vpack.c.b16 %v1808, %v1807
    %v1840 = vpack.c.b16 %v1810, %v1809
    %v1841 = vpack.c.b16 %v1812, %v1811
    %v1842 = vpack.c.b16 %v1814, %v1813
    %v1843 = vpack.c.b16 %v1816, %v1815
    %v1844 = vpack.c.b16 %v1818, %v1817
    %v1845 = vpack.c.b16 %v1820, %v1819
    %v1846 = vpack.c.b16 %v1822, %v1821
    %v1847 = vpack.c.b16 %v1824, %v1823
    %v1848 = vpack.c.b16 %v1826, %v1825
    %v1849 = vpack.c.b16 %v1828, %v1827
    %v1850 = vpack.c.b16 %v1830, %v1829
    %v1851 = vpack.c.b16 %v1832, %v1831
    %v1852 = vpack.c.b16 %v1834, %v1833
    %v1853 = vpack.c.b16 %v1836, %v1835
    %v1854 = vpack.c.b16 %v1838, %v1837
    %1871 = vmatprep.subr.bf16.mxu0 0
    %1872 = vmatpush1.bf16.msra.mxu0 %v1846
    %1873 = vmatprep.subr.bf16.mxu0 0
    %1874 = vmatpush1.bf16.msra.mxu0 %v1845
    %1875 = vmatprep.subr.bf16.mxu0 0
    %1876 = vmatpush1.bf16.msra.mxu0 %v1844
    %1877 = vmatprep.subr.bf16.mxu0 0
    %1878 = vmatpush1.bf16.msra.mxu0 %v1843
    %1879 = vmatprep.subr.bf16.mxu0 0
    %1880 = vmatpush1.bf16.msra.mxu0 %v1842
    %1881 = vmatprep.subr.bf16.mxu0 0
    %1882 = vmatpush1.bf16.msra.mxu0 %v1841
    %1883 = vmatprep.subr.bf16.mxu0 0
    %1884 = vmatpush1.bf16.msra.mxu0 %v1840
    %1885 = vmatprep.subr.bf16.mxu0 0
    %1886 = vmatpush1.bf16.msra.mxu0 %v1839
    %1887 = vmatprep.subr.bf16.mxu0 0
    %1888 = vmatpush2.bf16.msra.mxu0 %v1854
    %1889 = vmatprep.subr.bf16.mxu0 0
    %1890 = vmatpush2.bf16.msra.mxu0 %v1853
    %1891 = vmatprep.subr.bf16.mxu0 0
    %1892 = vmatpush2.bf16.msra.mxu0 %v1852
    %1893 = vmatprep.subr.bf16.mxu0 0
    %1894 = vmatpush2.bf16.msra.mxu0 %v1851
    %1895 = vmatprep.subr.bf16.mxu0 0
    %1896 = vmatpush2.bf16.msra.mxu0 %v1850
    %1897 = vmatprep.subr.bf16.mxu0 0
    %1898 = vmatpush2.bf16.msra.mxu0 %v1849
    %1899 = vmatprep.subr.bf16.mxu0 0
    %1900 = vmatpush2.bf16.msra.mxu0 %v1848
    %1901 = vmatprep.subr.bf16.mxu0 0
    %1902 = vmatpush2.bf16.msra.mxu0 %v1847
    %1903 = vmatprep.mubr.bf16.mxu0 %v1770
    %1904 = vmatmul.mubr.bf16.gmra.mxu0 %v1769
    %v1905 = vpop.f32.mrf.mxu0
    %v1906 = vadd.f32 %v1774, %v1905
    %v1907 = vpop.f32.mrf.mxu0
    %v1908 = vpop.f32.mrf.mxu0
    %v1909 = vadd.f32 %v1774, %v1908
    %v1910 = vpop.f32.mrf.mxu0
    %1911 = vdwg.mxu0
    %v1912 = vrot.slane %v1906, 4
    %v1913 = vadd.f32 %v1906, %v1912
    %v1914 = vrot.slane %v1913, 2
    %v1915 = vadd.f32 %v1913, %v1914
    %v1916 = vrot.slane %v1915, 1
    %v1917 = vadd.f32 %v1915, %v1916
    %v1918 = vrot.slane %v1909, 4
    %v1919 = vadd.f32 %v1909, %v1918
    %v1920 = vrot.slane %v1919, 2
    %v1921 = vadd.f32 %v1919, %v1920
    %v1922 = vrot.slane %v1921, 1
    %v1923 = vadd.f32 %v1921, %v1922
    %v1924 = vmul.f32 %v1917, %v1058
    %v1925 = vmul.f32 %v1923, %v1058
    %v1926 = vsub.f32 %v1906, %v1924
    %v1927 = vsub.f32 %v1909, %v1925
    %v1928 = vmul.f32 %v1926, %v1926
    %v1929 = vmul.f32 %v1927, %v1927
    %v1930 = vrot.slane %v1928, 4
    %v1931 = vadd.f32 %v1928, %v1930
    %v1932 = vrot.slane %v1931, 2
    %v1933 = vadd.f32 %v1931, %v1932
    %v1934 = vrot.slane %v1933, 1
    %v1935 = vadd.f32 %v1933, %v1934
    %v1936 = vrot.slane %v1929, 4
    %v1937 = vadd.f32 %v1929, %v1936
    %v1938 = vrot.slane %v1937, 2
    %v1939 = vadd.f32 %v1937, %v1938
    %v1940 = vrot.slane %v1939, 1
    %v1941 = vadd.f32 %v1939, %v1940
    %v1942 = vmul.f32 %v1935, %v1058
    %v1943 = vmul.f32 %v1941, %v1058
    %v1944 = vadd.f32 %v1942, 1e-05
    %v1945 = vadd.f32 %v1943, 1e-05
    %v1946 = vrsqrt.pop %v1944
    %v1947 = vrsqrt.pop %v1945
    %v1948 = vmul.f32 %v1926, %v1946
    %v1949 = vmul.f32 %v1927, %v1947
    %v1950 = vlaneseq
    %v1951 = vshrl.u32 %v1950, 7
    %v1952 = vsub.s32 3, %v1951
    %v1953 = vrot.slane %v68, %v1952
    %v1954 = vmul.f32 %v1948, %v1953
    %v1955 = vmul.f32 %v1949, %v1953
    %v1956 = vlaneseq
    %v1957 = vshrl.u32 %v1956, 7
    %v1958 = vsub.s32 4, %v1957
    %v1959 = vrot.slane %v68, %v1958
    %v1960 = vadd.f32 %v1954, %v1959
    %v1961 = vadd.f32 %v1955, %v1959
    %v1962 = vmax.f32 %v1960, 0.0
    %v1963 = vmax.f32 %v1961, 0.0
    %v1964 = vpack.c.bf16 %v1963, %v1962
    %v1965 = vlaneseq
    %v1966 = vshrl.u32 %v1965, 7
    %v1967 = vsub.s32 5, %v1966
    %v1968 = vrot.slane %v68, %v1967
    %v1969 = vlaneseq
    %v1970 = vshrl.u32 %v1969, 7
    %v1971 = vsub.s32 5, %v1970
    %v1972 = vrot.slane %v69, %v1971
    %v1989 = vunpack.c.l.b16 %v71
    %v1990 = vunpack.c.h.b16 %v71
    %v1991 = vunpack.c.l.b16 %v73
    %v1992 = vunpack.c.h.b16 %v73
    %v1993 = vunpack.c.l.b16 %v75
    %v1994 = vunpack.c.h.b16 %v75
    %v1995 = vunpack.c.l.b16 %v77
    %v1996 = vunpack.c.h.b16 %v77
    %v1997 = vunpack.c.l.b16 %v79
    %v1998 = vunpack.c.h.b16 %v79
    %v1999 = vunpack.c.l.b16 %v81
    %v2000 = vunpack.c.h.b16 %v81
    %v2001 = vunpack.c.l.b16 %v83
    %v2002 = vunpack.c.h.b16 %v83
    %v2003 = vunpack.c.l.b16 %v85
    %v2004 = vunpack.c.h.b16 %v85
    %v2005 = vunpack.c.l.b16 %v87
    %v2006 = vunpack.c.h.b16 %v87
    %v2007 = vunpack.c.l.b16 %v89
    %v2008 = vunpack.c.h.b16 %v89
    %v2009 = vunpack.c.l.b16 %v91
    %v2010 = vunpack.c.h.b16 %v91
    %v2011 = vunpack.c.l.b16 %v93
    %v2012 = vunpack.c.h.b16 %v93
    %v2013 = vunpack.c.l.b16 %v95
    %v2014 = vunpack.c.h.b16 %v95
    %v2015 = vunpack.c.l.b16 %v97
    %v2016 = vunpack.c.h.b16 %v97
    %v2017 = vunpack.c.l.b16 %v99
    %v2018 = vunpack.c.h.b16 %v99
    %v2019 = vunpack.c.l.b16 %v101
    %v2020 = vunpack.c.h.b16 %v101
    %v2021 = vpack.c.b16 %v1991, %v1989
    %v2022 = vpack.c.b16 %v1992, %v1990
    %v2023 = vpack.c.b16 %v1995, %v1993
    %v2024 = vpack.c.b16 %v1996, %v1994
    %v2025 = vpack.c.b16 %v1999, %v1997
    %v2026 = vpack.c.b16 %v2000, %v1998
    %v2027 = vpack.c.b16 %v2003, %v2001
    %v2028 = vpack.c.b16 %v2004, %v2002
    %v2029 = vpack.c.b16 %v2007, %v2005
    %v2030 = vpack.c.b16 %v2008, %v2006
    %v2031 = vpack.c.b16 %v2011, %v2009
    %v2032 = vpack.c.b16 %v2012, %v2010
    %v2033 = vpack.c.b16 %v2015, %v2013
    %v2034 = vpack.c.b16 %v2016, %v2014
    %v2035 = vpack.c.b16 %v2019, %v2017
    %v2036 = vpack.c.b16 %v2020, %v2018
    %2053 = vmatprep.subr.bf16.mxu0 %v2036
    %2054 = vmatpush1.bf16.msra.mxu0 %v2035
    %2055 = vmatprep.subr.bf16.mxu0 %v2034
    %2056 = vmatpush1.bf16.msra.mxu0 %v2033
    %2057 = vmatprep.subr.bf16.mxu0 %v2032
    %2058 = vmatpush1.bf16.msra.mxu0 %v2031
    %2059 = vmatprep.subr.bf16.mxu0 %v2030
    %2060 = vmatpush1.bf16.msra.mxu0 %v2029
    %2061 = vmatprep.subr.bf16.mxu0 %v2028
    %2062 = vmatpush1.bf16.msra.mxu0 %v2027
    %2063 = vmatprep.subr.bf16.mxu0 %v2026
    %2064 = vmatpush1.bf16.msra.mxu0 %v2025
    %2065 = vmatprep.subr.bf16.mxu0 %v2024
    %2066 = vmatpush1.bf16.msra.mxu0 %v2023
    %2067 = vmatprep.subr.bf16.mxu0 %v2022
    %2068 = vmatpush1.bf16.msra.mxu0 %v2021
    %2069 = vmatprep.subr.bf16.mxu0 0
    %2070 = vmatpush2.bf16.msra.mxu0 0
    %2071 = vmatprep.subr.bf16.mxu0 0
    %2072 = vmatpush2.bf16.msra.mxu0 0
    %2073 = vmatprep.subr.bf16.mxu0 0
    %2074 = vmatpush2.bf16.msra.mxu0 0
    %2075 = vmatprep.subr.bf16.mxu0 0
    %2076 = vmatpush2.bf16.msra.mxu0 0
    %2077 = vmatprep.subr.bf16.mxu0 0
    %2078 = vmatpush2.bf16.msra.mxu0 0
    %2079 = vmatprep.subr.bf16.mxu0 0
    %2080 = vmatpush2.bf16.msra.mxu0 0
    %2081 = vmatprep.subr.bf16.mxu0 0
    %2082 = vmatpush2.bf16.msra.mxu0 0
    %2083 = vmatprep.subr.bf16.mxu0 0
    %2084 = vmatpush2.bf16.msra.mxu0 0
    %2085 = vmatprep.mubr.bf16.mxu0 0
    %2086 = vmatmul.mubr.bf16.gmra.mxu0 %v1964
    %v2087 = vpop.f32.mrf.mxu0
    %v2088 = vadd.f32 %v1968, %v2087
    %v2089 = vpop.f32.mrf.mxu0
    %v2090 = vadd.f32 %v1972, %v2089
    %v2091 = vpop.f32.mrf.mxu0
    %v2092 = vadd.f32 %v1968, %v2091
    %v2093 = vpop.f32.mrf.mxu0
    %v2094 = vadd.f32 %v1972, %v2093
    %2095 = vdwg.mxu0
    %v2096 = vmul.f32 %v2088, %v1767
    %v2097 = vmul.f32 %v2090, %v1768
    %v2098 = vmul.f32 %v2092, %v1765
    %v2099 = vmul.f32 %v2094, %v1766
    %v2100 = vadd.f32 %v2096, %v2097
    %2101 = vadd.xlane.f32.xlu0 %v2100
    %v2102 = vpop.xlane.xlu0 %2101
    %v2103 = vadd.f32 %v2098, %v2099
    %2104 = vadd.xlane.f32.xlu0 %v2103
    %v2105 = vpop.xlane.xlu0 %2104
    %v2106 = vmul.f32 %v2088, %v2088
    %v2107 = vmul.f32 %v2090, %v2090
    %v2108 = vmul.f32 %v2092, %v2092
    %v2109 = vmul.f32 %v2094, %v2094
    %v2110 = vadd.f32 %v2106, %v2107
    %2111 = vadd.xlane.f32.xlu0 %v2110
    %v2112 = vpop.xlane.xlu0 %2111
    %v2113 = vadd.f32 %v2108, %v2109
    %2114 = vadd.xlane.f32.xlu0 %v2113
    %v2115 = vpop.xlane.xlu0 %2114
    %v2116 = vmul.f32 %v1767, %v1767
    %v2117 = vmul.f32 %v1768, %v1768
    %v2118 = vmul.f32 %v1765, %v1765
    %v2119 = vmul.f32 %v1766, %v1766
    %v2120 = vadd.f32 %v2116, %v2117
    %2121 = vadd.xlane.f32.xlu0 %v2120
    %v2122 = vpop.xlane.xlu0 %2121
    %v2123 = vadd.f32 %v2118, %v2119
    %2124 = vadd.xlane.f32.xlu0 %v2123
    %v2125 = vpop.xlane.xlu0 %2124
    %v2126 = vmax.f32 %v2112, 1e-16
    %v2127 = vmax.f32 %v2115, 1e-16
    %v2128 = vrsqrt.pop %v2126
    %v2129 = vrsqrt.pop %v2127
    %v2130 = vmul.f32 %v2102, %v2128
    %v2131 = vmul.f32 %v2105, %v2129
    %v2132 = vmax.f32 %v2122, 1e-16
    %v2133 = vmax.f32 %v2125, 1e-16
    %v2134 = vrsqrt.pop %v2132
    %v2135 = vrsqrt.pop %v2133
    %v2136 = vmul.f32 %v2130, %v2134
    %v2137 = vmul.f32 %v2131, %v2135
    %vm2138 = vcmask 7168
    %v2139 = vsel %vm2138, %v2136, 0.0
    %v2140 = vsel %vm2138, %v2137, 0.0
    %v2141 = vadd.f32 %v2139, %v2140
    %2142 = vadd.xlane.f32.xlu0 %v2141
    %v2143 = vpop.xlane.xlu0 %2142
    %v2144 = vrot.slane %v2143, 4
    %v2145 = vadd.f32 %v2143, %v2144
    %v2146 = vrot.slane %v2145, 2
    %v2147 = vadd.f32 %v2145, %v2146
    %v2148 = vrot.slane %v2147, 1
    %v2149 = vadd.f32 %v2147, %v2148
    %s2150 = vtos %v2149
    %s2151 = smul.f32 %s2150, -0.0625
    %s2152 = scalar_lea.smem [#allocation8], 0
    %2153 = sst [smem:[%s2152]] %s2151
    // Predicated region
    $region38: #{simsiam_forward.1} parent=1 // pred_check
      _
    $region39: #{simsiam_forward.1} parent=1 // pred_check_branch
      %2155 = sbr.rel (0) target = $region41
    $region40: #{simsiam_forward.1} parent=1 // pred_region
      %s2157 = ssub.s32 16, 16
      %2158 = vsyncadd [#allocation4], %s2157
      %2161 = dma.smem_to_hbm [#allocation8], 16, %s6, [#allocation4]
    $region41: #{simsiam_forward.1} parent=1 // pred_fallthru
      _
    // Predicated region
    $region42: #{simsiam_forward.1} parent=1 // pred_check
      _
    $region43: #{simsiam_forward.1} parent=1 // pred_check_branch
      %2163 = sbr.rel (0) target = $region45
    $region44: #{simsiam_forward.1} parent=1 // pred_region
      %2164 = dma.done [#allocation4], 16
    $region45: #{simsiam_forward.1} parent=1 // pred_fallthru
      _
    %2165 = sfence
    %2166 = vsyncpa [#allocation3], 1
    %2167 = vsyncpa [#allocation6], 1
    %2168 = vsyncpa [#allocation4], 1

</llo_original>
